<compile_context>
chip_gen: v5e
topology: v5e:2x2
jax: 0.10.0
libtpu: 0.0.40
codegen_flags: <defaults>
</compile_context>

<pallas_src>
import math
import functools

import jax
import jax.numpy as jnp
import numpy as np
from jax import lax
from jax.experimental import pallas as pl
from jax.experimental.pallas import tpu as pltpu


def _abstractor_kernel(xq_ref, xk_ref, a_ref,
                       wq_ref, bq_ref, wk_ref, bk_ref, wv_ref, bv_ref,
                       wo_ref, bo_ref, w1_ref, b1_ref, w2_ref, b2_ref,
                       out_ref,
                       q_scr, m_scr, l_scr, acc_scr,
                       *, num_heads, scale, compute_dtype):
    ki = pl.program_id(2)
    nk = pl.num_programs(2)

    # ---- init: once per (batch, q-tile) --------------------------------
    @pl.when(ki == 0)
    def _init():
        xq = xq_ref[0]                                   # (tq, object_dim)
        for h in range(num_heads):
            qh = jnp.dot(xq, wq_ref[h], preferred_element_type=jnp.float32)
            # fold 1/sqrt(head_dim) into q once (not into every score block)
            q_scr[h] = ((qh + bq_ref[h]) * scale).astype(compute_dtype)
        m_scr[...] = jnp.full(m_scr.shape, -jnp.inf, m_scr.dtype)
        l_scr[...] = jnp.zeros(l_scr.shape, l_scr.dtype)
        acc_scr[...] = jnp.zeros(acc_scr.shape, acc_scr.dtype)

    xk = xk_ref[0]                                       # (tk, object_dim)
    av = a_ref[0]                                        # (tk, symbol_dim)

    # ---- per-kv-tile online-softmax update (heads statically unrolled) --
    for h in range(num_heads):
        kh = (jnp.dot(xk, wk_ref[h], preferred_element_type=jnp.float32)
              + bk_ref[h]).astype(compute_dtype)         # (tk, hd)
        vh = (jnp.dot(av, wv_ref[h], preferred_element_type=jnp.float32)
              + bv_ref[h]).astype(compute_dtype)         # (tk, hd)

        # scores: contract head_dim of q and k directly (no explicit .T)
        s = lax.dot_general(q_scr[h], kh, (((1,), (1,)), ((), ())),
                            preferred_element_type=jnp.float32)   # (tq, tk)

        m_prev = m_scr[h]
        m_new = jnp.maximum(m_prev, jnp.max(s, axis=-1, keepdims=True))
        alpha = jnp.exp(m_prev - m_new)
        p = jnp.exp(s - m_new)
        l_scr[h] = alpha * l_scr[h] + jnp.sum(p, axis=-1, keepdims=True)
        acc_scr[h] = alpha * acc_scr[h] + jnp.dot(
            p.astype(compute_dtype), vh, preferred_element_type=jnp.float32)
        m_scr[h] = m_new

    # ---- finalize: out-proj (decomposed over heads) + feed-forward -------
    @pl.when(ki == nk - 1)
    def _finalize():
        tq = acc_scr.shape[1]
        symbol_dim = wo_ref.shape[-1]
        y = jnp.zeros((tq, symbol_dim), jnp.float32)
        for h in range(num_heads):
            attn_h = acc_scr[h] * pl.reciprocal(l_scr[h], approx=True)
            y = y + jnp.dot(attn_h.astype(compute_dtype), wo_ref[h],
                            preferred_element_type=jnp.float32)
        # resid_att=False, dropout=identity (eval), norm1=Identity
        y = y + bo_ref[...]
        h1 = jnp.dot(y.astype(compute_dtype), w1_ref[...],
                     preferred_element_type=jnp.float32) + b1_ref[...]
        h1 = jnp.maximum(h1, 0.0)
        out = jnp.dot(h1.astype(compute_dtype), w2_ref[...],
                      preferred_element_type=jnp.float32) + b2_ref[...]
        # resid_ff=False, dropout2=identity, norm2=Identity
        out_ref[0] = out.astype(out_ref.dtype)


def _pick_tile(S, max_tile=256):
    for t in (max_tile, 128, 64, 32, 16, 8):
        if t <= S and S % t == 0:
            return t
    return S


def abstractor_encoder_layer(X, A, params, *, num_heads, max_tile=256,
                             compute_dtype=jnp.bfloat16):
    """X: (B, S, object_dim), A: (B, S, symbol_dim). Returns (B, S, symbol_dim)."""
    B, S, object_dim = X.shape
    symbol_dim = A.shape[-1]
    ff_dim = params["w1"].shape[1]
    assert symbol_dim % num_heads == 0
    head_dim = symbol_dim // num_heads

    tq = _pick_tile(S, max_tile)
    tk = _pick_tile(S, max_tile)
    nq, nk = S // tq, S // tk

    f32 = jnp.float32
    # bf16 operands for the MXU fast path; biases + accumulation stay fp32.
    Xc = X.astype(compute_dtype)
    Ac = A.astype(compute_dtype)
    # Per-head weight slices, prepared once at the XLA level (cheap).
    wq = params["wq"].reshape(object_dim, num_heads, head_dim).transpose(1, 0, 2).astype(compute_dtype)
    wk = params["wk"].reshape(object_dim, num_heads, head_dim).transpose(1, 0, 2).astype(compute_dtype)
    wv = params["wv"].reshape(symbol_dim, num_heads, head_dim).transpose(1, 0, 2).astype(compute_dtype)
    wo = params["wo"].reshape(num_heads, head_dim, symbol_dim).astype(compute_dtype)
    bq = params["bq"].reshape(num_heads, 1, head_dim).astype(f32)
    bk = params["bk"].reshape(num_heads, 1, head_dim).astype(f32)
    bv = params["bv"].reshape(num_heads, 1, head_dim).astype(f32)
    bo = params["bo"].astype(f32)
    w1 = params["w1"].astype(compute_dtype)
    b1 = params["b1"].astype(f32)
    w2 = params["w2"].astype(compute_dtype)
    b2 = params["b2"].astype(f32)

    kernel = functools.partial(_abstractor_kernel,
                               num_heads=num_heads,
                               scale=1.0 / math.sqrt(head_dim),
                               compute_dtype=compute_dtype)

    def resident(shape):
        # Whole-array block, constant index map -> fetched once, stays resident
        # in VMEM (Pallas elides DMA when the block index doesn't change).
        # TODO(synk): on v7x (64 MiB VMEM) consider pipeline_mode=pl.Buffered(1)
        # to avoid double-buffering these constant blocks.
        return pl.BlockSpec(shape, lambda b, qi, ki: (0,) * len(shape))

    in_specs = [
        pl.BlockSpec((1, tq, object_dim), lambda b, qi, ki: (b, qi, 0)),  # X (query tile)
        pl.BlockSpec((1, tk, object_dim), lambda b, qi, ki: (b, ki, 0)),  # X (key tile)
        pl.BlockSpec((1, tk, symbol_dim), lambda b, qi, ki: (b, ki, 0)),  # A (value tile)
        resident(wq.shape), resident(bq.shape),
        resident(wk.shape), resident(bk.shape),
        resident(wv.shape), resident(bv.shape),
        resident(wo.shape), resident(bo.shape),
        resident(w1.shape), resident(b1.shape),
        resident(w2.shape), resident(b2.shape),
    ]
    out_spec = pl.BlockSpec((1, tq, symbol_dim), lambda b, qi, ki: (b, qi, 0))

    scratch = [
        pltpu.VMEM((num_heads, tq, head_dim), compute_dtype),  # scaled Q, per head
        pltpu.VMEM((num_heads, tq, 1), f32),                   # running max
        pltpu.VMEM((num_heads, tq, 1), f32),                   # running denom
        pltpu.VMEM((num_heads, tq, head_dim), f32),            # unnormalized P@V
    ]

    flops = (2 * B * S * object_dim * symbol_dim                        # Q proj
             + 2 * B * nq * S * (object_dim + symbol_dim) * symbol_dim  # K,V proj (per q-tile)
             + 4 * B * S * S * symbol_dim                               # scores + P@V
             + 2 * B * S * symbol_dim * symbol_dim                      # out proj
             + 4 * B * S * symbol_dim * ff_dim)                         # feed-forward
    bytes_accessed = (int(Xc.size) * (1 + nq) + int(Ac.size) * nq) * 2 \
        + sum(int(w.size) for w in (wq, wk, wv, wo, w1, w2)) * 2 \
        + B * S * symbol_dim * 4
    cost = pl.CostEstimate(flops=int(flops),
                           transcendentals=int(B * num_heads * S * S),
                           bytes_accessed=int(bytes_accessed))

    return pl.pallas_call(
        kernel,
        out_shape=jax.ShapeDtypeStruct((B, S, symbol_dim), X.dtype),
        grid_spec=pltpu.PrefetchScalarGridSpec(
            num_scalar_prefetch=0,
            grid=(B, nq, nk),
            in_specs=in_specs,
            out_specs=out_spec,
            scratch_shapes=scratch),
        compiler_params=pltpu.CompilerParams(
            dimension_semantics=("parallel", "parallel", "arbitrary"),
            vmem_limit_bytes=64 * 1024 * 1024),
        cost_estimate=cost,
    )(Xc, Xc, Ac, wq, bq, wk, bk, wv, bv, wo, bo, w1, b1, w2, b2)


def _reference(X, A, params, *, num_heads):
    """Plain-JAX fp32 reference mirroring the PyTorch forward (eval mode)."""
    B, S, _ = X.shape
    symbol_dim = A.shape[-1]
    head_dim = symbol_dim // num_heads

    q = X @ params["wq"] + params["bq"]
    k = X @ params["wk"] + params["bk"]
    v = A @ params["wv"] + params["bv"]

    def split_heads(t):
        return t.reshape(B, S, num_heads, head_dim).transpose(0, 2, 1, 3)

    qh, kh, vh = split_heads(q), split_heads(k), split_heads(v)
    scores = jnp.einsum("bhqd,bhkd->bhqk", qh, kh) / math.sqrt(head_dim)
    w = jax.nn.softmax(scores, axis=-1)
    attn = jnp.einsum("bhqk,bhkd->bhqd", w, vh)
    attn = attn.transpose(0, 2, 1, 3).reshape(B, S, symbol_dim)
    attn = attn @ params["wo"] + params["bo"]

    h1 = jnp.maximum(attn @ params["w1"] + params["b1"], 0.0)
    return h1 @ params["w2"] + params["b2"]


def _init_params(key, object_dim, symbol_dim, ff_dim):
    """Deterministic init; weights stored as (in_features, out_features)."""
    ks = jax.random.split(key, 12)

    def lin(kw, kb, fan_in, fan_out):
        bound = 1.0 / math.sqrt(fan_in)
        w = jax.random.uniform(kw, (fan_in, fan_out), jnp.float32, -bound, bound)
        b = jax.random.uniform(kb, (1, fan_out), jnp.float32, -bound, bound)
        return w, b

    p = {}
    p["wq"], p["bq"] = lin(ks[0], ks[1], object_dim, symbol_dim)
    p["wk"], p["bk"] = lin(ks[2], ks[3], object_dim, symbol_dim)
    p["wv"], p["bv"] = lin(ks[4], ks[5], symbol_dim, symbol_dim)
    p["wo"], p["bo"] = lin(ks[6], ks[7], symbol_dim, symbol_dim)
    p["w1"], p["b1"] = lin(ks[8], ks[9], symbol_dim, ff_dim)
    p["w2"], p["b2"] = lin(ks[10], ks[11], ff_dim, symbol_dim)
    return p


if __name__ == "__main__":
    B, S = 2, 8
    object_dim, symbol_dim, num_heads, ff_dim = 32, 32, 4, 64

    key = jax.random.PRNGKey(0)
    kx, ka, kp = jax.random.split(key, 3)
    X = jax.random.normal(kx, (B, S, object_dim), jnp.float32)
    A = jax.random.normal(ka, (B, S, symbol_dim), jnp.float32)
    params = _init_params(kp, object_dim, symbol_dim, ff_dim)

    out = abstractor_encoder_layer(X, A, params, num_heads=num_heads)
    out = jax.block_until_ready(out)

    # Kernel runs bf16 matmul operands with fp32 accumulation; compare against
    # the fp32 reference to bf16 precision.
    ref = _reference(X, A, params, num_heads=num_heads)
    np.testing.assert_allclose(np.asarray(out), np.asarray(ref),
                               rtol=2e-2, atol=2e-2)
    print("KERNEL_OK")
</pallas_src>

<mosaic_0001>
module attributes {stable_mosaic.version = 11 : i64} {
  func.func @_abstractor_kernel(%arg0: i32, %arg1: i32, %arg2: i32, %arg3: memref<1x8x32xbf16, #tpu.memory_space<vmem>>, %arg4: memref<1x8x32xbf16, #tpu.memory_space<vmem>>, %arg5: memref<1x8x32xbf16, #tpu.memory_space<vmem>>, %arg6: memref<4x32x8xbf16, #tpu.memory_space<vmem>>, %arg7: memref<4x1x8xf32, #tpu.memory_space<vmem>>, %arg8: memref<4x32x8xbf16, #tpu.memory_space<vmem>>, %arg9: memref<4x1x8xf32, #tpu.memory_space<vmem>>, %arg10: memref<4x32x8xbf16, #tpu.memory_space<vmem>>, %arg11: memref<4x1x8xf32, #tpu.memory_space<vmem>>, %arg12: memref<4x8x32xbf16, #tpu.memory_space<vmem>>, %arg13: memref<1x32xf32, #tpu.memory_space<vmem>>, %arg14: memref<32x64xbf16, #tpu.memory_space<vmem>>, %arg15: memref<1x64xf32, #tpu.memory_space<vmem>>, %arg16: memref<64x32xbf16, #tpu.memory_space<vmem>>, %arg17: memref<1x32xf32, #tpu.memory_space<vmem>>, %arg18: memref<1x8x32xf32, #tpu.memory_space<vmem>>, %arg19: memref<4x8x8xbf16, #tpu.memory_space<vmem>>, %arg20: memref<4x8x1xf32, #tpu.memory_space<vmem>>, %arg21: memref<4x8x1xf32, #tpu.memory_space<vmem>>, %arg22: memref<4x8x8xf32, #tpu.memory_space<vmem>>) attributes {dimension_semantics = [#tpu.dimension_semantics<parallel>, #tpu.dimension_semantics<parallel>, #tpu.dimension_semantics<arbitrary>], iteration_bounds = array<i64: 2, 1, 1>, scalar_prefetch = 0 : i64, scratch_operands = 4 : i64, tpu.core_type = #tpu.core_type<tc>, window_params = [{transform_indices = @transform_0, window_bounds = array<i64: 1, 8, 32>}, {transform_indices = @transform_1, window_bounds = array<i64: 1, 8, 32>}, {transform_indices = @transform_2, window_bounds = array<i64: 1, 8, 32>}, {pipeline_mode = #tpu.pipeline_mode<synchronous>, transform_indices = @transform_3, window_bounds = array<i64: 4, 32, 8>}, {pipeline_mode = #tpu.pipeline_mode<synchronous>, transform_indices = @transform_4, window_bounds = array<i64: 4, 1, 8>}, {pipeline_mode = #tpu.pipeline_mode<synchronous>, transform_indices = @transform_5, window_bounds = array<i64: 4, 32, 8>}, {pipeline_mode = #tpu.pipeline_mode<synchronous>, transform_indices = @transform_6, window_bounds = array<i64: 4, 1, 8>}, {pipeline_mode = #tpu.pipeline_mode<synchronous>, transform_indices = @transform_7, window_bounds = array<i64: 4, 32, 8>}, {pipeline_mode = #tpu.pipeline_mode<synchronous>, transform_indices = @transform_8, window_bounds = array<i64: 4, 1, 8>}, {pipeline_mode = #tpu.pipeline_mode<synchronous>, transform_indices = @transform_9, window_bounds = array<i64: 4, 8, 32>}, {pipeline_mode = #tpu.pipeline_mode<synchronous>, transform_indices = @transform_10, window_bounds = array<i64: 1, 32>}, {pipeline_mode = #tpu.pipeline_mode<synchronous>, transform_indices = @transform_11, window_bounds = array<i64: 32, 64>}, {pipeline_mode = #tpu.pipeline_mode<synchronous>, transform_indices = @transform_12, window_bounds = array<i64: 1, 64>}, {pipeline_mode = #tpu.pipeline_mode<synchronous>, transform_indices = @transform_13, window_bounds = array<i64: 64, 32>}, {pipeline_mode = #tpu.pipeline_mode<synchronous>, transform_indices = @transform_14, window_bounds = array<i64: 1, 32>}, {transform_indices = @transform_15, window_bounds = array<i64: 1, 8, 32>}]} {
    %c0_i32 = arith.constant 0 : i32
    %0 = arith.cmpi eq, %arg2, %c0_i32 : i32
    %1 = arith.extui %0 : i1 to i32
    %c0_i32_0 = arith.constant 0 : i32
    %2 = arith.cmpi ne, %1, %c0_i32_0 : i32
    scf.if %2 {
      %c0_160 = arith.constant 0 : index
      %c0_161 = arith.constant 0 : index
      %c0_162 = arith.constant 0 : index
      %214 = vector.load %arg3[%c0_160, %c0_161, %c0_162] : memref<1x8x32xbf16, #tpu.memory_space<vmem>>, vector<1x8x32xbf16>
      %215 = vector.shape_cast %214 : vector<1x8x32xbf16> to vector<8x32xbf16>
      %c0_163 = arith.constant 0 : index
      %c0_164 = arith.constant 0 : index
      %c0_165 = arith.constant 0 : index
      %216 = vector.load %arg6[%c0_163, %c0_164, %c0_165] : memref<4x32x8xbf16, #tpu.memory_space<vmem>>, vector<1x32x8xbf16>
      %217 = vector.shape_cast %216 : vector<1x32x8xbf16> to vector<32x8xbf16>
      %cst_166 = arith.constant dense<0.000000e+00> : vector<8x8xf32>
      %218 = tpu.matmul %215, %217, %cst_166 {dimension_numbers = #tpu.dot_dimension_numbers<[1], [0], [0], [1], [0, 0, 1, 1], [], []>} : vector<8x32xbf16>, vector<32x8xbf16>, vector<8x8xf32> -> vector<8x8xf32>
      %c0_167 = arith.constant 0 : index
      %c0_168 = arith.constant 0 : index
      %c0_169 = arith.constant 0 : index
      %219 = vector.load %arg7[%c0_167, %c0_168, %c0_169] : memref<4x1x8xf32, #tpu.memory_space<vmem>>, vector<1x1x8xf32>
      %220 = vector.shape_cast %219 : vector<1x1x8xf32> to vector<1x8xf32>
      %221 = vector.broadcast %220 : vector<1x8xf32> to vector<8x8xf32>
      %222 = arith.addf %218, %221 : vector<8x8xf32>
      %cst_170 = arith.constant 0.353553385 : f32
      %223 = vector.broadcast %cst_170 : f32 to vector<8x8xf32>
      %224 = arith.mulf %222, %223 : vector<8x8xf32>
      %225 = arith.truncf %224 : vector<8x8xf32> to vector<8x8xbf16>
      %c0_171 = arith.constant 0 : index
      %c0_172 = arith.constant 0 : index
      %c0_173 = arith.constant 0 : index
      %226 = vector.load %arg19[%c0_171, %c0_172, %c0_173] : memref<4x8x8xbf16, #tpu.memory_space<vmem>>, vector<1x8x8xbf16>
      %227 = vector.shape_cast %226 : vector<1x8x8xbf16> to vector<8x8xbf16>
      %228 = vector.shape_cast %225 : vector<8x8xbf16> to vector<1x8x8xbf16>
      tpu.vector_store %arg19[%c0_171, %c0_172, %c0_173], %228 {strides = array<i32>} : memref<4x8x8xbf16, #tpu.memory_space<vmem>>, vector<1x8x8xbf16>,
      %c1_174 = arith.constant 1 : index
      %c0_175 = arith.constant 0 : index
      %c0_176 = arith.constant 0 : index
      %229 = vector.load %arg6[%c1_174, %c0_175, %c0_176] : memref<4x32x8xbf16, #tpu.memory_space<vmem>>, vector<1x32x8xbf16>
      %230 = vector.shape_cast %229 : vector<1x32x8xbf16> to vector<32x8xbf16>
      %cst_177 = arith.constant dense<0.000000e+00> : vector<8x8xf32>
      %231 = tpu.matmul %215, %230, %cst_177 {dimension_numbers = #tpu.dot_dimension_numbers<[1], [0], [0], [1], [0, 0, 1, 1], [], []>} : vector<8x32xbf16>, vector<32x8xbf16>, vector<8x8xf32> -> vector<8x8xf32>
      %c1_178 = arith.constant 1 : index
      %c0_179 = arith.constant 0 : index
      %c0_180 = arith.constant 0 : index
      %232 = vector.load %arg7[%c1_178, %c0_179, %c0_180] : memref<4x1x8xf32, #tpu.memory_space<vmem>>, vector<1x1x8xf32>
      %233 = vector.shape_cast %232 : vector<1x1x8xf32> to vector<1x8xf32>
      %234 = vector.broadcast %233 : vector<1x8xf32> to vector<8x8xf32>
      %235 = arith.addf %231, %234 : vector<8x8xf32>
      %cst_181 = arith.constant 0.353553385 : f32
      %236 = vector.broadcast %cst_181 : f32 to vector<8x8xf32>
      %237 = arith.mulf %235, %236 : vector<8x8xf32>
      %238 = arith.truncf %237 : vector<8x8xf32> to vector<8x8xbf16>
      %c1_182 = arith.constant 1 : index
      %c0_183 = arith.constant 0 : index
      %c0_184 = arith.constant 0 : index
      %239 = vector.load %arg19[%c1_182, %c0_183, %c0_184] : memref<4x8x8xbf16, #tpu.memory_space<vmem>>, vector<1x8x8xbf16>
      %240 = vector.shape_cast %239 : vector<1x8x8xbf16> to vector<8x8xbf16>
      %241 = vector.shape_cast %238 : vector<8x8xbf16> to vector<1x8x8xbf16>
      tpu.vector_store %arg19[%c1_182, %c0_183, %c0_184], %241 {strides = array<i32>} : memref<4x8x8xbf16, #tpu.memory_space<vmem>>, vector<1x8x8xbf16>,
      %c2_185 = arith.constant 2 : index
      %c0_186 = arith.constant 0 : index
      %c0_187 = arith.constant 0 : index
      %242 = vector.load %arg6[%c2_185, %c0_186, %c0_187] : memref<4x32x8xbf16, #tpu.memory_space<vmem>>, vector<1x32x8xbf16>
      %243 = vector.shape_cast %242 : vector<1x32x8xbf16> to vector<32x8xbf16>
      %cst_188 = arith.constant dense<0.000000e+00> : vector<8x8xf32>
      %244 = tpu.matmul %215, %243, %cst_188 {dimension_numbers = #tpu.dot_dimension_numbers<[1], [0], [0], [1], [0, 0, 1, 1], [], []>} : vector<8x32xbf16>, vector<32x8xbf16>, vector<8x8xf32> -> vector<8x8xf32>
      %c2_189 = arith.constant 2 : index
      %c0_190 = arith.constant 0 : index
      %c0_191 = arith.constant 0 : index
      %245 = vector.load %arg7[%c2_189, %c0_190, %c0_191] : memref<4x1x8xf32, #tpu.memory_space<vmem>>, vector<1x1x8xf32>
      %246 = vector.shape_cast %245 : vector<1x1x8xf32> to vector<1x8xf32>
      %247 = vector.broadcast %246 : vector<1x8xf32> to vector<8x8xf32>
      %248 = arith.addf %244, %247 : vector<8x8xf32>
      %cst_192 = arith.constant 0.353553385 : f32
      %249 = vector.broadcast %cst_192 : f32 to vector<8x8xf32>
      %250 = arith.mulf %248, %249 : vector<8x8xf32>
      %251 = arith.truncf %250 : vector<8x8xf32> to vector<8x8xbf16>
      %c2_193 = arith.constant 2 : index
      %c0_194 = arith.constant 0 : index
      %c0_195 = arith.constant 0 : index
      %252 = vector.load %arg19[%c2_193, %c0_194, %c0_195] : memref<4x8x8xbf16, #tpu.memory_space<vmem>>, vector<1x8x8xbf16>
      %253 = vector.shape_cast %252 : vector<1x8x8xbf16> to vector<8x8xbf16>
      %254 = vector.shape_cast %251 : vector<8x8xbf16> to vector<1x8x8xbf16>
      tpu.vector_store %arg19[%c2_193, %c0_194, %c0_195], %254 {strides = array<i32>} : memref<4x8x8xbf16, #tpu.memory_space<vmem>>, vector<1x8x8xbf16>,
      %c3_196 = arith.constant 3 : index
      %c0_197 = arith.constant 0 : index
      %c0_198 = arith.constant 0 : index
      %255 = vector.load %arg6[%c3_196, %c0_197, %c0_198] : memref<4x32x8xbf16, #tpu.memory_space<vmem>>, vector<1x32x8xbf16>
      %256 = vector.shape_cast %255 : vector<1x32x8xbf16> to vector<32x8xbf16>
      %cst_199 = arith.constant dense<0.000000e+00> : vector<8x8xf32>
      %257 = tpu.matmul %215, %256, %cst_199 {dimension_numbers = #tpu.dot_dimension_numbers<[1], [0], [0], [1], [0, 0, 1, 1], [], []>} : vector<8x32xbf16>, vector<32x8xbf16>, vector<8x8xf32> -> vector<8x8xf32>
      %c3_200 = arith.constant 3 : index
      %c0_201 = arith.constant 0 : index
      %c0_202 = arith.constant 0 : index
      %258 = vector.load %arg7[%c3_200, %c0_201, %c0_202] : memref<4x1x8xf32, #tpu.memory_space<vmem>>, vector<1x1x8xf32>
      %259 = vector.shape_cast %258 : vector<1x1x8xf32> to vector<1x8xf32>
      %260 = vector.broadcast %259 : vector<1x8xf32> to vector<8x8xf32>
      %261 = arith.addf %257, %260 : vector<8x8xf32>
      %cst_203 = arith.constant 0.353553385 : f32
      %262 = vector.broadcast %cst_203 : f32 to vector<8x8xf32>
      %263 = arith.mulf %261, %262 : vector<8x8xf32>
      %264 = arith.truncf %263 : vector<8x8xf32> to vector<8x8xbf16>
      %c3_204 = arith.constant 3 : index
      %c0_205 = arith.constant 0 : index
      %c0_206 = arith.constant 0 : index
      %265 = vector.load %arg19[%c3_204, %c0_205, %c0_206] : memref<4x8x8xbf16, #tpu.memory_space<vmem>>, vector<1x8x8xbf16>
      %266 = vector.shape_cast %265 : vector<1x8x8xbf16> to vector<8x8xbf16>
      %267 = vector.shape_cast %264 : vector<8x8xbf16> to vector<1x8x8xbf16>
      tpu.vector_store %arg19[%c3_204, %c0_205, %c0_206], %267 {strides = array<i32>} : memref<4x8x8xbf16, #tpu.memory_space<vmem>>, vector<1x8x8xbf16>,
      %cst_207 = arith.constant 0xFF800000 : f32
      %268 = vector.broadcast %cst_207 : f32 to vector<4x8x1xf32>
      %c0_208 = arith.constant 0 : index
      %c0_209 = arith.constant 0 : index
      %c0_210 = arith.constant 0 : index
      %269 = vector.load %arg20[%c0_208, %c0_209, %c0_210] : memref<4x8x1xf32, #tpu.memory_space<vmem>>, vector<4x8x1xf32>
      tpu.vector_store %arg20[%c0_208, %c0_209, %c0_210], %268 {strides = array<i32>} : memref<4x8x1xf32, #tpu.memory_space<vmem>>, vector<4x8x1xf32>,
      %cst_211 = arith.constant 0.000000e+00 : f32
      %270 = vector.broadcast %cst_211 : f32 to vector<4x8x1xf32>
      %c0_212 = arith.constant 0 : index
      %c0_213 = arith.constant 0 : index
      %c0_214 = arith.constant 0 : index
      %271 = vector.load %arg21[%c0_212, %c0_213, %c0_214] : memref<4x8x1xf32, #tpu.memory_space<vmem>>, vector<4x8x1xf32>
      tpu.vector_store %arg21[%c0_212, %c0_213, %c0_214], %270 {strides = array<i32>} : memref<4x8x1xf32, #tpu.memory_space<vmem>>, vector<4x8x1xf32>,
      %cst_215 = arith.constant 0.000000e+00 : f32
      %272 = vector.broadcast %cst_215 : f32 to vector<4x8x8xf32>
      %c0_216 = arith.constant 0 : index
      %c0_217 = arith.constant 0 : index
      %c0_218 = arith.constant 0 : index
      %273 = vector.load %arg22[%c0_216, %c0_217, %c0_218] : memref<4x8x8xf32, #tpu.memory_space<vmem>>, vector<4x8x8xf32>
      tpu.vector_store %arg22[%c0_216, %c0_217, %c0_218], %272 {strides = array<i32>} : memref<4x8x8xf32, #tpu.memory_space<vmem>>, vector<4x8x8xf32>,
    } else {
    }
    %c0 = arith.constant 0 : index
    %c0_1 = arith.constant 0 : index
    %c0_2 = arith.constant 0 : index
    %3 = vector.load %arg4[%c0, %c0_1, %c0_2] : memref<1x8x32xbf16, #tpu.memory_space<vmem>>, vector<1x8x32xbf16>
    %4 = vector.shape_cast %3 : vector<1x8x32xbf16> to vector<8x32xbf16>
    %c0_3 = arith.constant 0 : index
    %c0_4 = arith.constant 0 : index
    %c0_5 = arith.constant 0 : index
    %5 = vector.load %arg5[%c0_3, %c0_4, %c0_5] : memref<1x8x32xbf16, #tpu.memory_space<vmem>>, vector<1x8x32xbf16>
    %6 = vector.shape_cast %5 : vector<1x8x32xbf16> to vector<8x32xbf16>
    %c0_6 = arith.constant 0 : index
    %c0_7 = arith.constant 0 : index
    %c0_8 = arith.constant 0 : index
    %7 = vector.load %arg8[%c0_6, %c0_7, %c0_8] : memref<4x32x8xbf16, #tpu.memory_space<vmem>>, vector<1x32x8xbf16>
    %8 = vector.shape_cast %7 : vector<1x32x8xbf16> to vector<32x8xbf16>
    %cst = arith.constant dense<0.000000e+00> : vector<8x8xf32>
    %9 = tpu.matmul %4, %8, %cst {dimension_numbers = #tpu.dot_dimension_numbers<[1], [0], [0], [1], [0, 0, 1, 1], [], []>} : vector<8x32xbf16>, vector<32x8xbf16>, vector<8x8xf32> -> vector<8x8xf32>
    %c0_9 = arith.constant 0 : index
    %c0_10 = arith.constant 0 : index
    %c0_11 = arith.constant 0 : index
    %10 = vector.load %arg9[%c0_9, %c0_10, %c0_11] : memref<4x1x8xf32, #tpu.memory_space<vmem>>, vector<1x1x8xf32>
    %11 = vector.shape_cast %10 : vector<1x1x8xf32> to vector<1x8xf32>
    %12 = vector.broadcast %11 : vector<1x8xf32> to vector<8x8xf32>
    %13 = arith.addf %9, %12 : vector<8x8xf32>
    %14 = arith.truncf %13 : vector<8x8xf32> to vector<8x8xbf16>
    %c0_12 = arith.constant 0 : index
    %c0_13 = arith.constant 0 : index
    %c0_14 = arith.constant 0 : index
    %15 = vector.load %arg10[%c0_12, %c0_13, %c0_14] : memref<4x32x8xbf16, #tpu.memory_space<vmem>>, vector<1x32x8xbf16>
    %16 = vector.shape_cast %15 : vector<1x32x8xbf16> to vector<32x8xbf16>
    %cst_15 = arith.constant dense<0.000000e+00> : vector<8x8xf32>
    %17 = tpu.matmul %6, %16, %cst_15 {dimension_numbers = #tpu.dot_dimension_numbers<[1], [0], [0], [1], [0, 0, 1, 1], [], []>} : vector<8x32xbf16>, vector<32x8xbf16>, vector<8x8xf32> -> vector<8x8xf32>
    %c0_16 = arith.constant 0 : index
    %c0_17 = arith.constant 0 : index
    %c0_18 = arith.constant 0 : index
    %18 = vector.load %arg11[%c0_16, %c0_17, %c0_18] : memref<4x1x8xf32, #tpu.memory_space<vmem>>, vector<1x1x8xf32>
    %19 = vector.shape_cast %18 : vector<1x1x8xf32> to vector<1x8xf32>
    %20 = vector.broadcast %19 : vector<1x8xf32> to vector<8x8xf32>
    %21 = arith.addf %17, %20 : vector<8x8xf32>
    %22 = arith.truncf %21 : vector<8x8xf32> to vector<8x8xbf16>
    %c0_19 = arith.constant 0 : index
    %c0_20 = arith.constant 0 : index
    %c0_21 = arith.constant 0 : index
    %23 = vector.load %arg19[%c0_19, %c0_20, %c0_21] : memref<4x8x8xbf16, #tpu.memory_space<vmem>>, vector<1x8x8xbf16>
    %24 = vector.shape_cast %23 : vector<1x8x8xbf16> to vector<8x8xbf16>
    %cst_22 = arith.constant dense<0.000000e+00> : vector<8x8xf32>
    %25 = tpu.matmul %24, %14, %cst_22 {dimension_numbers = #tpu.dot_dimension_numbers<[1], [1], [0], [0], [0, 0, 1, 0], [], []>} : vector<8x8xbf16>, vector<8x8xbf16>, vector<8x8xf32> -> vector<8x8xf32>
    %c0_23 = arith.constant 0 : index
    %c0_24 = arith.constant 0 : index
    %c0_25 = arith.constant 0 : index
    %26 = vector.load %arg20[%c0_23, %c0_24, %c0_25] : memref<4x8x1xf32, #tpu.memory_space<vmem>>, vector<1x8x1xf32>
    %27 = vector.shape_cast %26 : vector<1x8x1xf32> to vector<8x1xf32>
    %cst_26 = arith.constant dense<0xFF800000> : vector<8xf32>
    %28 = vector.multi_reduction <maximumf>, %25, %cst_26 [1] : vector<8x8xf32> to vector<8xf32>
    %29 = vector.shape_cast %28 : vector<8xf32> to vector<8x1xf32>
    %30 = arith.maximumf %27, %29 : vector<8x1xf32>
    %31 = arith.subf %27, %30 : vector<8x1xf32>
    %32 = math.exp %31 : vector<8x1xf32>
    %33 = vector.broadcast %30 : vector<8x1xf32> to vector<8x8xf32>
    %34 = arith.subf %25, %33 : vector<8x8xf32>
    %35 = math.exp %34 : vector<8x8xf32>
    %c0_27 = arith.constant 0 : index
    %c0_28 = arith.constant 0 : index
    %c0_29 = arith.constant 0 : index
    %36 = vector.load %arg21[%c0_27, %c0_28, %c0_29] : memref<4x8x1xf32, #tpu.memory_space<vmem>>, vector<1x8x1xf32>
    %37 = vector.shape_cast %36 : vector<1x8x1xf32> to vector<8x1xf32>
    %38 = arith.mulf %32, %37 : vector<8x1xf32>
    %cst_30 = arith.constant dense<0.000000e+00> : vector<8xf32>
    %39 = vector.multi_reduction <add>, %35, %cst_30 [1] : vector<8x8xf32> to vector<8xf32>
    %40 = vector.shape_cast %39 : vector<8xf32> to vector<8x1xf32>
    %41 = arith.addf %38, %40 : vector<8x1xf32>
    %c0_31 = arith.constant 0 : index
    %c0_32 = arith.constant 0 : index
    %c0_33 = arith.constant 0 : index
    %42 = vector.load %arg21[%c0_31, %c0_32, %c0_33] : memref<4x8x1xf32, #tpu.memory_space<vmem>>, vector<1x8x1xf32>
    %43 = vector.shape_cast %42 : vector<1x8x1xf32> to vector<8x1xf32>
    %44 = vector.shape_cast %41 : vector<8x1xf32> to vector<1x8x1xf32>
    tpu.vector_store %arg21[%c0_31, %c0_32, %c0_33], %44 {strides = array<i32>} : memref<4x8x1xf32, #tpu.memory_space<vmem>>, vector<1x8x1xf32>,
    %c0_34 = arith.constant 0 : index
    %c0_35 = arith.constant 0 : index
    %c0_36 = arith.constant 0 : index
    %45 = vector.load %arg22[%c0_34, %c0_35, %c0_36] : memref<4x8x8xf32, #tpu.memory_space<vmem>>, vector<1x8x8xf32>
    %46 = vector.shape_cast %45 : vector<1x8x8xf32> to vector<8x8xf32>
    %47 = vector.broadcast %32 : vector<8x1xf32> to vector<8x8xf32>
    %48 = arith.mulf %47, %46 : vector<8x8xf32>
    %49 = arith.truncf %35 : vector<8x8xf32> to vector<8x8xbf16>
    %cst_37 = arith.constant dense<0.000000e+00> : vector<8x8xf32>
    %50 = tpu.matmul %49, %22, %cst_37 {dimension_numbers = #tpu.dot_dimension_numbers<[1], [0], [0], [1], [0, 0, 1, 1], [], []>} : vector<8x8xbf16>, vector<8x8xbf16>, vector<8x8xf32> -> vector<8x8xf32>
    %51 = arith.addf %48, %50 : vector<8x8xf32>
    %c0_38 = arith.constant 0 : index
    %c0_39 = arith.constant 0 : index
    %c0_40 = arith.constant 0 : index
    %52 = vector.load %arg22[%c0_38, %c0_39, %c0_40] : memref<4x8x8xf32, #tpu.memory_space<vmem>>, vector<1x8x8xf32>
    %53 = vector.shape_cast %52 : vector<1x8x8xf32> to vector<8x8xf32>
    %54 = vector.shape_cast %51 : vector<8x8xf32> to vector<1x8x8xf32>
    tpu.vector_store %arg22[%c0_38, %c0_39, %c0_40], %54 {strides = array<i32>} : memref<4x8x8xf32, #tpu.memory_space<vmem>>, vector<1x8x8xf32>,
    %c0_41 = arith.constant 0 : index
    %c0_42 = arith.constant 0 : index
    %c0_43 = arith.constant 0 : index
    %55 = vector.load %arg20[%c0_41, %c0_42, %c0_43] : memref<4x8x1xf32, #tpu.memory_space<vmem>>, vector<1x8x1xf32>
    %56 = vector.shape_cast %55 : vector<1x8x1xf32> to vector<8x1xf32>
    %57 = vector.shape_cast %30 : vector<8x1xf32> to vector<1x8x1xf32>
    tpu.vector_store %arg20[%c0_41, %c0_42, %c0_43], %57 {strides = array<i32>} : memref<4x8x1xf32, #tpu.memory_space<vmem>>, vector<1x8x1xf32>,
    %c1 = arith.constant 1 : index
    %c0_44 = arith.constant 0 : index
    %c0_45 = arith.constant 0 : index
    %58 = vector.load %arg8[%c1, %c0_44, %c0_45] : memref<4x32x8xbf16, #tpu.memory_space<vmem>>, vector<1x32x8xbf16>
    %59 = vector.shape_cast %58 : vector<1x32x8xbf16> to vector<32x8xbf16>
    %cst_46 = arith.constant dense<0.000000e+00> : vector<8x8xf32>
    %60 = tpu.matmul %4, %59, %cst_46 {dimension_numbers = #tpu.dot_dimension_numbers<[1], [0], [0], [1], [0, 0, 1, 1], [], []>} : vector<8x32xbf16>, vector<32x8xbf16>, vector<8x8xf32> -> vector<8x8xf32>
    %c1_47 = arith.constant 1 : index
    %c0_48 = arith.constant 0 : index
    %c0_49 = arith.constant 0 : index
    %61 = vector.load %arg9[%c1_47, %c0_48, %c0_49] : memref<4x1x8xf32, #tpu.memory_space<vmem>>, vector<1x1x8xf32>
    %62 = vector.shape_cast %61 : vector<1x1x8xf32> to vector<1x8xf32>
    %63 = vector.broadcast %62 : vector<1x8xf32> to vector<8x8xf32>
    %64 = arith.addf %60, %63 : vector<8x8xf32>
    %65 = arith.truncf %64 : vector<8x8xf32> to vector<8x8xbf16>
    %c1_50 = arith.constant 1 : index
    %c0_51 = arith.constant 0 : index
    %c0_52 = arith.constant 0 : index
    %66 = vector.load %arg10[%c1_50, %c0_51, %c0_52] : memref<4x32x8xbf16, #tpu.memory_space<vmem>>, vector<1x32x8xbf16>
    %67 = vector.shape_cast %66 : vector<1x32x8xbf16> to vector<32x8xbf16>
    %cst_53 = arith.constant dense<0.000000e+00> : vector<8x8xf32>
    %68 = tpu.matmul %6, %67, %cst_53 {dimension_numbers = #tpu.dot_dimension_numbers<[1], [0], [0], [1], [0, 0, 1, 1], [], []>} : vector<8x32xbf16>, vector<32x8xbf16>, vector<8x8xf32> -> vector<8x8xf32>
    %c1_54 = arith.constant 1 : index
    %c0_55 = arith.constant 0 : index
    %c0_56 = arith.constant 0 : index
    %69 = vector.load %arg11[%c1_54, %c0_55, %c0_56] : memref<4x1x8xf32, #tpu.memory_space<vmem>>, vector<1x1x8xf32>
    %70 = vector.shape_cast %69 : vector<1x1x8xf32> to vector<1x8xf32>
    %71 = vector.broadcast %70 : vector<1x8xf32> to vector<8x8xf32>
    %72 = arith.addf %68, %71 : vector<8x8xf32>
    %73 = arith.truncf %72 : vector<8x8xf32> to vector<8x8xbf16>
    %c1_57 = arith.constant 1 : index
    %c0_58 = arith.constant 0 : index
    %c0_59 = arith.constant 0 : index
    %74 = vector.load %arg19[%c1_57, %c0_58, %c0_59] : memref<4x8x8xbf16, #tpu.memory_space<vmem>>, vector<1x8x8xbf16>
    %75 = vector.shape_cast %74 : vector<1x8x8xbf16> to vector<8x8xbf16>
    %cst_60 = arith.constant dense<0.000000e+00> : vector<8x8xf32>
    %76 = tpu.matmul %75, %65, %cst_60 {dimension_numbers = #tpu.dot_dimension_numbers<[1], [1], [0], [0], [0, 0, 1, 0], [], []>} : vector<8x8xbf16>, vector<8x8xbf16>, vector<8x8xf32> -> vector<8x8xf32>
    %c1_61 = arith.constant 1 : index
    %c0_62 = arith.constant 0 : index
    %c0_63 = arith.constant 0 : index
    %77 = vector.load %arg20[%c1_61, %c0_62, %c0_63] : memref<4x8x1xf32, #tpu.memory_space<vmem>>, vector<1x8x1xf32>
    %78 = vector.shape_cast %77 : vector<1x8x1xf32> to vector<8x1xf32>
    %cst_64 = arith.constant dense<0xFF800000> : vector<8xf32>
    %79 = vector.multi_reduction <maximumf>, %76, %cst_64 [1] : vector<8x8xf32> to vector<8xf32>
    %80 = vector.shape_cast %79 : vector<8xf32> to vector<8x1xf32>
    %81 = arith.maximumf %78, %80 : vector<8x1xf32>
    %82 = arith.subf %78, %81 : vector<8x1xf32>
    %83 = math.exp %82 : vector<8x1xf32>
    %84 = vector.broadcast %81 : vector<8x1xf32> to vector<8x8xf32>
    %85 = arith.subf %76, %84 : vector<8x8xf32>
    %86 = math.exp %85 : vector<8x8xf32>
    %c1_65 = arith.constant 1 : index
    %c0_66 = arith.constant 0 : index
    %c0_67 = arith.constant 0 : index
    %87 = vector.load %arg21[%c1_65, %c0_66, %c0_67] : memref<4x8x1xf32, #tpu.memory_space<vmem>>, vector<1x8x1xf32>
    %88 = vector.shape_cast %87 : vector<1x8x1xf32> to vector<8x1xf32>
    %89 = arith.mulf %83, %88 : vector<8x1xf32>
    %cst_68 = arith.constant dense<0.000000e+00> : vector<8xf32>
    %90 = vector.multi_reduction <add>, %86, %cst_68 [1] : vector<8x8xf32> to vector<8xf32>
    %91 = vector.shape_cast %90 : vector<8xf32> to vector<8x1xf32>
    %92 = arith.addf %89, %91 : vector<8x1xf32>
    %c1_69 = arith.constant 1 : index
    %c0_70 = arith.constant 0 : index
    %c0_71 = arith.constant 0 : index
    %93 = vector.load %arg21[%c1_69, %c0_70, %c0_71] : memref<4x8x1xf32, #tpu.memory_space<vmem>>, vector<1x8x1xf32>
    %94 = vector.shape_cast %93 : vector<1x8x1xf32> to vector<8x1xf32>
    %95 = vector.shape_cast %92 : vector<8x1xf32> to vector<1x8x1xf32>
    tpu.vector_store %arg21[%c1_69, %c0_70, %c0_71], %95 {strides = array<i32>} : memref<4x8x1xf32, #tpu.memory_space<vmem>>, vector<1x8x1xf32>,
    %c1_72 = arith.constant 1 : index
    %c0_73 = arith.constant 0 : index
    %c0_74 = arith.constant 0 : index
    %96 = vector.load %arg22[%c1_72, %c0_73, %c0_74] : memref<4x8x8xf32, #tpu.memory_space<vmem>>, vector<1x8x8xf32>
    %97 = vector.shape_cast %96 : vector<1x8x8xf32> to vector<8x8xf32>
    %98 = vector.broadcast %83 : vector<8x1xf32> to vector<8x8xf32>
    %99 = arith.mulf %98, %97 : vector<8x8xf32>
    %100 = arith.truncf %86 : vector<8x8xf32> to vector<8x8xbf16>
    %cst_75 = arith.constant dense<0.000000e+00> : vector<8x8xf32>
    %101 = tpu.matmul %100, %73, %cst_75 {dimension_numbers = #tpu.dot_dimension_numbers<[1], [0], [0], [1], [0, 0, 1, 1], [], []>} : vector<8x8xbf16>, vector<8x8xbf16>, vector<8x8xf32> -> vector<8x8xf32>
    %102 = arith.addf %99, %101 : vector<8x8xf32>
    %c1_76 = arith.constant 1 : index
    %c0_77 = arith.constant 0 : index
    %c0_78 = arith.constant 0 : index
    %103 = vector.load %arg22[%c1_76, %c0_77, %c0_78] : memref<4x8x8xf32, #tpu.memory_space<vmem>>, vector<1x8x8xf32>
    %104 = vector.shape_cast %103 : vector<1x8x8xf32> to vector<8x8xf32>
    %105 = vector.shape_cast %102 : vector<8x8xf32> to vector<1x8x8xf32>
    tpu.vector_store %arg22[%c1_76, %c0_77, %c0_78], %105 {strides = array<i32>} : memref<4x8x8xf32, #tpu.memory_space<vmem>>, vector<1x8x8xf32>,
    %c1_79 = arith.constant 1 : index
    %c0_80 = arith.constant 0 : index
    %c0_81 = arith.constant 0 : index
    %106 = vector.load %arg20[%c1_79, %c0_80, %c0_81] : memref<4x8x1xf32, #tpu.memory_space<vmem>>, vector<1x8x1xf32>
    %107 = vector.shape_cast %106 : vector<1x8x1xf32> to vector<8x1xf32>
    %108 = vector.shape_cast %81 : vector<8x1xf32> to vector<1x8x1xf32>
    tpu.vector_store %arg20[%c1_79, %c0_80, %c0_81], %108 {strides = array<i32>} : memref<4x8x1xf32, #tpu.memory_space<vmem>>, vector<1x8x1xf32>,
    %c2 = arith.constant 2 : index
    %c0_82 = arith.constant 0 : index
    %c0_83 = arith.constant 0 : index
    %109 = vector.load %arg8[%c2, %c0_82, %c0_83] : memref<4x32x8xbf16, #tpu.memory_space<vmem>>, vector<1x32x8xbf16>
    %110 = vector.shape_cast %109 : vector<1x32x8xbf16> to vector<32x8xbf16>
    %cst_84 = arith.constant dense<0.000000e+00> : vector<8x8xf32>
    %111 = tpu.matmul %4, %110, %cst_84 {dimension_numbers = #tpu.dot_dimension_numbers<[1], [0], [0], [1], [0, 0, 1, 1], [], []>} : vector<8x32xbf16>, vector<32x8xbf16>, vector<8x8xf32> -> vector<8x8xf32>
    %c2_85 = arith.constant 2 : index
    %c0_86 = arith.constant 0 : index
    %c0_87 = arith.constant 0 : index
    %112 = vector.load %arg9[%c2_85, %c0_86, %c0_87] : memref<4x1x8xf32, #tpu.memory_space<vmem>>, vector<1x1x8xf32>
    %113 = vector.shape_cast %112 : vector<1x1x8xf32> to vector<1x8xf32>
    %114 = vector.broadcast %113 : vector<1x8xf32> to vector<8x8xf32>
    %115 = arith.addf %111, %114 : vector<8x8xf32>
    %116 = arith.truncf %115 : vector<8x8xf32> to vector<8x8xbf16>
    %c2_88 = arith.constant 2 : index
    %c0_89 = arith.constant 0 : index
    %c0_90 = arith.constant 0 : index
    %117 = vector.load %arg10[%c2_88, %c0_89, %c0_90] : memref<4x32x8xbf16, #tpu.memory_space<vmem>>, vector<1x32x8xbf16>
    %118 = vector.shape_cast %117 : vector<1x32x8xbf16> to vector<32x8xbf16>
    %cst_91 = arith.constant dense<0.000000e+00> : vector<8x8xf32>
    %119 = tpu.matmul %6, %118, %cst_91 {dimension_numbers = #tpu.dot_dimension_numbers<[1], [0], [0], [1], [0, 0, 1, 1], [], []>} : vector<8x32xbf16>, vector<32x8xbf16>, vector<8x8xf32> -> vector<8x8xf32>
    %c2_92 = arith.constant 2 : index
    %c0_93 = arith.constant 0 : index
    %c0_94 = arith.constant 0 : index
    %120 = vector.load %arg11[%c2_92, %c0_93, %c0_94] : memref<4x1x8xf32, #tpu.memory_space<vmem>>, vector<1x1x8xf32>
    %121 = vector.shape_cast %120 : vector<1x1x8xf32> to vector<1x8xf32>
    %122 = vector.broadcast %121 : vector<1x8xf32> to vector<8x8xf32>
    %123 = arith.addf %119, %122 : vector<8x8xf32>
    %124 = arith.truncf %123 : vector<8x8xf32> to vector<8x8xbf16>
    %c2_95 = arith.constant 2 : index
    %c0_96 = arith.constant 0 : index
    %c0_97 = arith.constant 0 : index
    %125 = vector.load %arg19[%c2_95, %c0_96, %c0_97] : memref<4x8x8xbf16, #tpu.memory_space<vmem>>, vector<1x8x8xbf16>
    %126 = vector.shape_cast %125 : vector<1x8x8xbf16> to vector<8x8xbf16>
    %cst_98 = arith.constant dense<0.000000e+00> : vector<8x8xf32>
    %127 = tpu.matmul %126, %116, %cst_98 {dimension_numbers = #tpu.dot_dimension_numbers<[1], [1], [0], [0], [0, 0, 1, 0], [], []>} : vector<8x8xbf16>, vector<8x8xbf16>, vector<8x8xf32> -> vector<8x8xf32>
    %c2_99 = arith.constant 2 : index
    %c0_100 = arith.constant 0 : index
    %c0_101 = arith.constant 0 : index
    %128 = vector.load %arg20[%c2_99, %c0_100, %c0_101] : memref<4x8x1xf32, #tpu.memory_space<vmem>>, vector<1x8x1xf32>
    %129 = vector.shape_cast %128 : vector<1x8x1xf32> to vector<8x1xf32>
    %cst_102 = arith.constant dense<0xFF800000> : vector<8xf32>
    %130 = vector.multi_reduction <maximumf>, %127, %cst_102 [1] : vector<8x8xf32> to vector<8xf32>
    %131 = vector.shape_cast %130 : vector<8xf32> to vector<8x1xf32>
    %132 = arith.maximumf %129, %131 : vector<8x1xf32>
    %133 = arith.subf %129, %132 : vector<8x1xf32>
    %134 = math.exp %133 : vector<8x1xf32>
    %135 = vector.broadcast %132 : vector<8x1xf32> to vector<8x8xf32>
    %136 = arith.subf %127, %135 : vector<8x8xf32>
    %137 = math.exp %136 : vector<8x8xf32>
    %c2_103 = arith.constant 2 : index
    %c0_104 = arith.constant 0 : index
    %c0_105 = arith.constant 0 : index
    %138 = vector.load %arg21[%c2_103, %c0_104, %c0_105] : memref<4x8x1xf32, #tpu.memory_space<vmem>>, vector<1x8x1xf32>
    %139 = vector.shape_cast %138 : vector<1x8x1xf32> to vector<8x1xf32>
    %140 = arith.mulf %134, %139 : vector<8x1xf32>
    %cst_106 = arith.constant dense<0.000000e+00> : vector<8xf32>
    %141 = vector.multi_reduction <add>, %137, %cst_106 [1] : vector<8x8xf32> to vector<8xf32>
    %142 = vector.shape_cast %141 : vector<8xf32> to vector<8x1xf32>
    %143 = arith.addf %140, %142 : vector<8x1xf32>
    %c2_107 = arith.constant 2 : index
    %c0_108 = arith.constant 0 : index
    %c0_109 = arith.constant 0 : index
    %144 = vector.load %arg21[%c2_107, %c0_108, %c0_109] : memref<4x8x1xf32, #tpu.memory_space<vmem>>, vector<1x8x1xf32>
    %145 = vector.shape_cast %144 : vector<1x8x1xf32> to vector<8x1xf32>
    %146 = vector.shape_cast %143 : vector<8x1xf32> to vector<1x8x1xf32>
    tpu.vector_store %arg21[%c2_107, %c0_108, %c0_109], %146 {strides = array<i32>} : memref<4x8x1xf32, #tpu.memory_space<vmem>>, vector<1x8x1xf32>,
    %c2_110 = arith.constant 2 : index
    %c0_111 = arith.constant 0 : index
    %c0_112 = arith.constant 0 : index
    %147 = vector.load %arg22[%c2_110, %c0_111, %c0_112] : memref<4x8x8xf32, #tpu.memory_space<vmem>>, vector<1x8x8xf32>
    %148 = vector.shape_cast %147 : vector<1x8x8xf32> to vector<8x8xf32>
    %149 = vector.broadcast %134 : vector<8x1xf32> to vector<8x8xf32>
    %150 = arith.mulf %149, %148 : vector<8x8xf32>
    %151 = arith.truncf %137 : vector<8x8xf32> to vector<8x8xbf16>
    %cst_113 = arith.constant dense<0.000000e+00> : vector<8x8xf32>
    %152 = tpu.matmul %151, %124, %cst_113 {dimension_numbers = #tpu.dot_dimension_numbers<[1], [0], [0], [1], [0, 0, 1, 1], [], []>} : vector<8x8xbf16>, vector<8x8xbf16>, vector<8x8xf32> -> vector<8x8xf32>
    %153 = arith.addf %150, %152 : vector<8x8xf32>
    %c2_114 = arith.constant 2 : index
    %c0_115 = arith.constant 0 : index
    %c0_116 = arith.constant 0 : index
    %154 = vector.load %arg22[%c2_114, %c0_115, %c0_116] : memref<4x8x8xf32, #tpu.memory_space<vmem>>, vector<1x8x8xf32>
    %155 = vector.shape_cast %154 : vector<1x8x8xf32> to vector<8x8xf32>
    %156 = vector.shape_cast %153 : vector<8x8xf32> to vector<1x8x8xf32>
    tpu.vector_store %arg22[%c2_114, %c0_115, %c0_116], %156 {strides = array<i32>} : memref<4x8x8xf32, #tpu.memory_space<vmem>>, vector<1x8x8xf32>,
    %c2_117 = arith.constant 2 : index
    %c0_118 = arith.constant 0 : index
    %c0_119 = arith.constant 0 : index
    %157 = vector.load %arg20[%c2_117, %c0_118, %c0_119] : memref<4x8x1xf32, #tpu.memory_space<vmem>>, vector<1x8x1xf32>
    %158 = vector.shape_cast %157 : vector<1x8x1xf32> to vector<8x1xf32>
    %159 = vector.shape_cast %132 : vector<8x1xf32> to vector<1x8x1xf32>
    tpu.vector_store %arg20[%c2_117, %c0_118, %c0_119], %159 {strides = array<i32>} : memref<4x8x1xf32, #tpu.memory_space<vmem>>, vector<1x8x1xf32>,
    %c3 = arith.constant 3 : index
    %c0_120 = arith.constant 0 : index
    %c0_121 = arith.constant 0 : index
    %160 = vector.load %arg8[%c3, %c0_120, %c0_121] : memref<4x32x8xbf16, #tpu.memory_space<vmem>>, vector<1x32x8xbf16>
    %161 = vector.shape_cast %160 : vector<1x32x8xbf16> to vector<32x8xbf16>
    %cst_122 = arith.constant dense<0.000000e+00> : vector<8x8xf32>
    %162 = tpu.matmul %4, %161, %cst_122 {dimension_numbers = #tpu.dot_dimension_numbers<[1], [0], [0], [1], [0, 0, 1, 1], [], []>} : vector<8x32xbf16>, vector<32x8xbf16>, vector<8x8xf32> -> vector<8x8xf32>
    %c3_123 = arith.constant 3 : index
    %c0_124 = arith.constant 0 : index
    %c0_125 = arith.constant 0 : index
    %163 = vector.load %arg9[%c3_123, %c0_124, %c0_125] : memref<4x1x8xf32, #tpu.memory_space<vmem>>, vector<1x1x8xf32>
    %164 = vector.shape_cast %163 : vector<1x1x8xf32> to vector<1x8xf32>
    %165 = vector.broadcast %164 : vector<1x8xf32> to vector<8x8xf32>
    %166 = arith.addf %162, %165 : vector<8x8xf32>
    %167 = arith.truncf %166 : vector<8x8xf32> to vector<8x8xbf16>
    %c3_126 = arith.constant 3 : index
    %c0_127 = arith.constant 0 : index
    %c0_128 = arith.constant 0 : index
    %168 = vector.load %arg10[%c3_126, %c0_127, %c0_128] : memref<4x32x8xbf16, #tpu.memory_space<vmem>>, vector<1x32x8xbf16>
    %169 = vector.shape_cast %168 : vector<1x32x8xbf16> to vector<32x8xbf16>
    %cst_129 = arith.constant dense<0.000000e+00> : vector<8x8xf32>
    %170 = tpu.matmul %6, %169, %cst_129 {dimension_numbers = #tpu.dot_dimension_numbers<[1], [0], [0], [1], [0, 0, 1, 1], [], []>} : vector<8x32xbf16>, vector<32x8xbf16>, vector<8x8xf32> -> vector<8x8xf32>
    %c3_130 = arith.constant 3 : index
    %c0_131 = arith.constant 0 : index
    %c0_132 = arith.constant 0 : index
    %171 = vector.load %arg11[%c3_130, %c0_131, %c0_132] : memref<4x1x8xf32, #tpu.memory_space<vmem>>, vector<1x1x8xf32>
    %172 = vector.shape_cast %171 : vector<1x1x8xf32> to vector<1x8xf32>
    %173 = vector.broadcast %172 : vector<1x8xf32> to vector<8x8xf32>
    %174 = arith.addf %170, %173 : vector<8x8xf32>
    %175 = arith.truncf %174 : vector<8x8xf32> to vector<8x8xbf16>
    %c3_133 = arith.constant 3 : index
    %c0_134 = arith.constant 0 : index
    %c0_135 = arith.constant 0 : index
    %176 = vector.load %arg19[%c3_133, %c0_134, %c0_135] : memref<4x8x8xbf16, #tpu.memory_space<vmem>>, vector<1x8x8xbf16>
    %177 = vector.shape_cast %176 : vector<1x8x8xbf16> to vector<8x8xbf16>
    %cst_136 = arith.constant dense<0.000000e+00> : vector<8x8xf32>
    %178 = tpu.matmul %177, %167, %cst_136 {dimension_numbers = #tpu.dot_dimension_numbers<[1], [1], [0], [0], [0, 0, 1, 0], [], []>} : vector<8x8xbf16>, vector<8x8xbf16>, vector<8x8xf32> -> vector<8x8xf32>
    %c3_137 = arith.constant 3 : index
    %c0_138 = arith.constant 0 : index
    %c0_139 = arith.constant 0 : index
    %179 = vector.load %arg20[%c3_137, %c0_138, %c0_139] : memref<4x8x1xf32, #tpu.memory_space<vmem>>, vector<1x8x1xf32>
    %180 = vector.shape_cast %179 : vector<1x8x1xf32> to vector<8x1xf32>
    %cst_140 = arith.constant dense<0xFF800000> : vector<8xf32>
    %181 = vector.multi_reduction <maximumf>, %178, %cst_140 [1] : vector<8x8xf32> to vector<8xf32>
    %182 = vector.shape_cast %181 : vector<8xf32> to vector<8x1xf32>
    %183 = arith.maximumf %180, %182 : vector<8x1xf32>
    %184 = arith.subf %180, %183 : vector<8x1xf32>
    %185 = math.exp %184 : vector<8x1xf32>
    %186 = vector.broadcast %183 : vector<8x1xf32> to vector<8x8xf32>
    %187 = arith.subf %178, %186 : vector<8x8xf32>
    %188 = math.exp %187 : vector<8x8xf32>
    %c3_141 = arith.constant 3 : index
    %c0_142 = arith.constant 0 : index
    %c0_143 = arith.constant 0 : index
    %189 = vector.load %arg21[%c3_141, %c0_142, %c0_143] : memref<4x8x1xf32, #tpu.memory_space<vmem>>, vector<1x8x1xf32>
    %190 = vector.shape_cast %189 : vector<1x8x1xf32> to vector<8x1xf32>
    %191 = arith.mulf %185, %190 : vector<8x1xf32>
    %cst_144 = arith.constant dense<0.000000e+00> : vector<8xf32>
    %192 = vector.multi_reduction <add>, %188, %cst_144 [1] : vector<8x8xf32> to vector<8xf32>
    %193 = vector.shape_cast %192 : vector<8xf32> to vector<8x1xf32>
    %194 = arith.addf %191, %193 : vector<8x1xf32>
    %c3_145 = arith.constant 3 : index
    %c0_146 = arith.constant 0 : index
    %c0_147 = arith.constant 0 : index
    %195 = vector.load %arg21[%c3_145, %c0_146, %c0_147] : memref<4x8x1xf32, #tpu.memory_space<vmem>>, vector<1x8x1xf32>
    %196 = vector.shape_cast %195 : vector<1x8x1xf32> to vector<8x1xf32>
    %197 = vector.shape_cast %194 : vector<8x1xf32> to vector<1x8x1xf32>
    tpu.vector_store %arg21[%c3_145, %c0_146, %c0_147], %197 {strides = array<i32>} : memref<4x8x1xf32, #tpu.memory_space<vmem>>, vector<1x8x1xf32>,
    %c3_148 = arith.constant 3 : index
    %c0_149 = arith.constant 0 : index
    %c0_150 = arith.constant 0 : index
    %198 = vector.load %arg22[%c3_148, %c0_149, %c0_150] : memref<4x8x8xf32, #tpu.memory_space<vmem>>, vector<1x8x8xf32>
    %199 = vector.shape_cast %198 : vector<1x8x8xf32> to vector<8x8xf32>
    %200 = vector.broadcast %185 : vector<8x1xf32> to vector<8x8xf32>
    %201 = arith.mulf %200, %199 : vector<8x8xf32>
    %202 = arith.truncf %188 : vector<8x8xf32> to vector<8x8xbf16>
    %cst_151 = arith.constant dense<0.000000e+00> : vector<8x8xf32>
    %203 = tpu.matmul %202, %175, %cst_151 {dimension_numbers = #tpu.dot_dimension_numbers<[1], [0], [0], [1], [0, 0, 1, 1], [], []>} : vector<8x8xbf16>, vector<8x8xbf16>, vector<8x8xf32> -> vector<8x8xf32>
    %204 = arith.addf %201, %203 : vector<8x8xf32>
    %c3_152 = arith.constant 3 : index
    %c0_153 = arith.constant 0 : index
    %c0_154 = arith.constant 0 : index
    %205 = vector.load %arg22[%c3_152, %c0_153, %c0_154] : memref<4x8x8xf32, #tpu.memory_space<vmem>>, vector<1x8x8xf32>
    %206 = vector.shape_cast %205 : vector<1x8x8xf32> to vector<8x8xf32>
    %207 = vector.shape_cast %204 : vector<8x8xf32> to vector<1x8x8xf32>
    tpu.vector_store %arg22[%c3_152, %c0_153, %c0_154], %207 {strides = array<i32>} : memref<4x8x8xf32, #tpu.memory_space<vmem>>, vector<1x8x8xf32>,
    %c3_155 = arith.constant 3 : index
    %c0_156 = arith.constant 0 : index
    %c0_157 = arith.constant 0 : index
    %208 = vector.load %arg20[%c3_155, %c0_156, %c0_157] : memref<4x8x1xf32, #tpu.memory_space<vmem>>, vector<1x8x1xf32>
    %209 = vector.shape_cast %208 : vector<1x8x1xf32> to vector<8x1xf32>
    %210 = vector.shape_cast %183 : vector<8x1xf32> to vector<1x8x1xf32>
    tpu.vector_store %arg20[%c3_155, %c0_156, %c0_157], %210 {strides = array<i32>} : memref<4x8x1xf32, #tpu.memory_space<vmem>>, vector<1x8x1xf32>,
    %c0_i32_158 = arith.constant 0 : i32
    %211 = arith.cmpi eq, %arg2, %c0_i32_158 : i32
    %212 = arith.extui %211 : i1 to i32
    %c0_i32_159 = arith.constant 0 : i32
    %213 = arith.cmpi ne, %212, %c0_i32_159 : i32
    scf.if %213 {
      %cst_160 = arith.constant 0.000000e+00 : f32
      %214 = vector.broadcast %cst_160 : f32 to vector<8x32xf32>
      %c0_161 = arith.constant 0 : index
      %c0_162 = arith.constant 0 : index
      %c0_163 = arith.constant 0 : index
      %215 = vector.load %arg22[%c0_161, %c0_162, %c0_163] : memref<4x8x8xf32, #tpu.memory_space<vmem>>, vector<1x8x8xf32>
      %216 = vector.shape_cast %215 : vector<1x8x8xf32> to vector<8x8xf32>
      %c0_164 = arith.constant 0 : index
      %c0_165 = arith.constant 0 : index
      %c0_166 = arith.constant 0 : index
      %217 = vector.load %arg21[%c0_164, %c0_165, %c0_166] : memref<4x8x1xf32, #tpu.memory_space<vmem>>, vector<1x8x1xf32>
      %218 = vector.shape_cast %217 : vector<1x8x1xf32> to vector<8x1xf32>
      %219 = tpu.reciprocal %218 {approx = true} : vector<8x1xf32> -> vector<8x1xf32>
      %220 = vector.broadcast %219 : vector<8x1xf32> to vector<8x8xf32>
      %221 = arith.mulf %216, %220 : vector<8x8xf32>
      %222 = arith.truncf %221 : vector<8x8xf32> to vector<8x8xbf16>
      %c0_167 = arith.constant 0 : index
      %c0_168 = arith.constant 0 : index
      %c0_169 = arith.constant 0 : index
      %223 = vector.load %arg12[%c0_167, %c0_168, %c0_169] : memref<4x8x32xbf16, #tpu.memory_space<vmem>>, vector<1x8x32xbf16>
      %224 = vector.shape_cast %223 : vector<1x8x32xbf16> to vector<8x32xbf16>
      %cst_170 = arith.constant dense<0.000000e+00> : vector<8x32xf32>
      %225 = tpu.matmul %222, %224, %cst_170 {dimension_numbers = #tpu.dot_dimension_numbers<[1], [0], [0], [1], [0, 0, 1, 1], [], []>} : vector<8x8xbf16>, vector<8x32xbf16>, vector<8x32xf32> -> vector<8x32xf32>
      %226 = arith.addf %214, %225 : vector<8x32xf32>
      %c1_171 = arith.constant 1 : index
      %c0_172 = arith.constant 0 : index
      %c0_173 = arith.constant 0 : index
      %227 = vector.load %arg22[%c1_171, %c0_172, %c0_173] : memref<4x8x8xf32, #tpu.memory_space<vmem>>, vector<1x8x8xf32>
      %228 = vector.shape_cast %227 : vector<1x8x8xf32> to vector<8x8xf32>
      %c1_174 = arith.constant 1 : index
      %c0_175 = arith.constant 0 : index
      %c0_176 = arith.constant 0 : index
      %229 = vector.load %arg21[%c1_174, %c0_175, %c0_176] : memref<4x8x1xf32, #tpu.memory_space<vmem>>, vector<1x8x1xf32>
      %230 = vector.shape_cast %229 : vector<1x8x1xf32> to vector<8x1xf32>
      %231 = tpu.reciprocal %230 {approx = true} : vector<8x1xf32> -> vector<8x1xf32>
      %232 = vector.broadcast %231 : vector<8x1xf32> to vector<8x8xf32>
      %233 = arith.mulf %228, %232 : vector<8x8xf32>
      %234 = arith.truncf %233 : vector<8x8xf32> to vector<8x8xbf16>
      %c1_177 = arith.constant 1 : index
      %c0_178 = arith.constant 0 : index
      %c0_179 = arith.constant 0 : index
      %235 = vector.load %arg12[%c1_177, %c0_178, %c0_179] : memref<4x8x32xbf16, #tpu.memory_space<vmem>>, vector<1x8x32xbf16>
      %236 = vector.shape_cast %235 : vector<1x8x32xbf16> to vector<8x32xbf16>
      %cst_180 = arith.constant dense<0.000000e+00> : vector<8x32xf32>
      %237 = tpu.matmul %234, %236, %cst_180 {dimension_numbers = #tpu.dot_dimension_numbers<[1], [0], [0], [1], [0, 0, 1, 1], [], []>} : vector<8x8xbf16>, vector<8x32xbf16>, vector<8x32xf32> -> vector<8x32xf32>
      %238 = arith.addf %226, %237 : vector<8x32xf32>
      %c2_181 = arith.constant 2 : index
      %c0_182 = arith.constant 0 : index
      %c0_183 = arith.constant 0 : index
      %239 = vector.load %arg22[%c2_181, %c0_182, %c0_183] : memref<4x8x8xf32, #tpu.memory_space<vmem>>, vector<1x8x8xf32>
      %240 = vector.shape_cast %239 : vector<1x8x8xf32> to vector<8x8xf32>
      %c2_184 = arith.constant 2 : index
      %c0_185 = arith.constant 0 : index
      %c0_186 = arith.constant 0 : index
      %241 = vector.load %arg21[%c2_184, %c0_185, %c0_186] : memref<4x8x1xf32, #tpu.memory_space<vmem>>, vector<1x8x1xf32>
      %242 = vector.shape_cast %241 : vector<1x8x1xf32> to vector<8x1xf32>
      %243 = tpu.reciprocal %242 {approx = true} : vector<8x1xf32> -> vector<8x1xf32>
      %244 = vector.broadcast %243 : vector<8x1xf32> to vector<8x8xf32>
      %245 = arith.mulf %240, %244 : vector<8x8xf32>
      %246 = arith.truncf %245 : vector<8x8xf32> to vector<8x8xbf16>
      %c2_187 = arith.constant 2 : index
      %c0_188 = arith.constant 0 : index
      %c0_189 = arith.constant 0 : index
      %247 = vector.load %arg12[%c2_187, %c0_188, %c0_189] : memref<4x8x32xbf16, #tpu.memory_space<vmem>>, vector<1x8x32xbf16>
      %248 = vector.shape_cast %247 : vector<1x8x32xbf16> to vector<8x32xbf16>
      %cst_190 = arith.constant dense<0.000000e+00> : vector<8x32xf32>
      %249 = tpu.matmul %246, %248, %cst_190 {dimension_numbers = #tpu.dot_dimension_numbers<[1], [0], [0], [1], [0, 0, 1, 1], [], []>} : vector<8x8xbf16>, vector<8x32xbf16>, vector<8x32xf32> -> vector<8x32xf32>
      %250 = arith.addf %238, %249 : vector<8x32xf32>
      %c3_191 = arith.constant 3 : index
      %c0_192 = arith.constant 0 : index
      %c0_193 = arith.constant 0 : index
      %251 = vector.load %arg22[%c3_191, %c0_192, %c0_193] : memref<4x8x8xf32, #tpu.memory_space<vmem>>, vector<1x8x8xf32>
      %252 = vector.shape_cast %251 : vector<1x8x8xf32> to vector<8x8xf32>
      %c3_194 = arith.constant 3 : index
      %c0_195 = arith.constant 0 : index
      %c0_196 = arith.constant 0 : index
      %253 = vector.load %arg21[%c3_194, %c0_195, %c0_196] : memref<4x8x1xf32, #tpu.memory_space<vmem>>, vector<1x8x1xf32>
      %254 = vector.shape_cast %253 : vector<1x8x1xf32> to vector<8x1xf32>
      %255 = tpu.reciprocal %254 {approx = true} : vector<8x1xf32> -> vector<8x1xf32>
      %256 = vector.broadcast %255 : vector<8x1xf32> to vector<8x8xf32>
      %257 = arith.mulf %252, %256 : vector<8x8xf32>
      %258 = arith.truncf %257 : vector<8x8xf32> to vector<8x8xbf16>
      %c3_197 = arith.constant 3 : index
      %c0_198 = arith.constant 0 : index
      %c0_199 = arith.constant 0 : index
      %259 = vector.load %arg12[%c3_197, %c0_198, %c0_199] : memref<4x8x32xbf16, #tpu.memory_space<vmem>>, vector<1x8x32xbf16>
      %260 = vector.shape_cast %259 : vector<1x8x32xbf16> to vector<8x32xbf16>
      %cst_200 = arith.constant dense<0.000000e+00> : vector<8x32xf32>
      %261 = tpu.matmul %258, %260, %cst_200 {dimension_numbers = #tpu.dot_dimension_numbers<[1], [0], [0], [1], [0, 0, 1, 1], [], []>} : vector<8x8xbf16>, vector<8x32xbf16>, vector<8x32xf32> -> vector<8x32xf32>
      %262 = arith.addf %250, %261 : vector<8x32xf32>
      %c0_201 = arith.constant 0 : index
      %c0_202 = arith.constant 0 : index
      %263 = vector.load %arg13[%c0_201, %c0_202] : memref<1x32xf32, #tpu.memory_space<vmem>>, vector<1x32xf32>
      %264 = vector.broadcast %263 : vector<1x32xf32> to vector<8x32xf32>
      %265 = arith.addf %262, %264 : vector<8x32xf32>
      %266 = arith.truncf %265 : vector<8x32xf32> to vector<8x32xbf16>
      %c0_203 = arith.constant 0 : index
      %c0_204 = arith.constant 0 : index
      %267 = vector.load %arg14[%c0_203, %c0_204] : memref<32x64xbf16, #tpu.memory_space<vmem>>, vector<32x64xbf16>
      %cst_205 = arith.constant dense<0.000000e+00> : vector<8x64xf32>
      %268 = tpu.matmul %266, %267, %cst_205 {dimension_numbers = #tpu.dot_dimension_numbers<[1], [0], [0], [1], [0, 0, 1, 1], [], []>} : vector<8x32xbf16>, vector<32x64xbf16>, vector<8x64xf32> -> vector<8x64xf32>
      %c0_206 = arith.constant 0 : index
      %c0_207 = arith.constant 0 : index
      %269 = vector.load %arg15[%c0_206, %c0_207] : memref<1x64xf32, #tpu.memory_space<vmem>>, vector<1x64xf32>
      %270 = vector.broadcast %269 : vector<1x64xf32> to vector<8x64xf32>
      %271 = arith.addf %268, %270 : vector<8x64xf32>
      %cst_208 = arith.constant 0.000000e+00 : f32
      %272 = vector.broadcast %cst_208 : f32 to vector<8x64xf32>
      %273 = arith.maximumf %271, %272 : vector<8x64xf32>
      %274 = arith.truncf %273 : vector<8x64xf32> to vector<8x64xbf16>
      %c0_209 = arith.constant 0 : index
      %c0_210 = arith.constant 0 : index
      %275 = vector.load %arg16[%c0_209, %c0_210] : memref<64x32xbf16, #tpu.memory_space<vmem>>, vector<64x32xbf16>
      %cst_211 = arith.constant dense<0.000000e+00> : vector<8x32xf32>
      %276 = tpu.matmul %274, %275, %cst_211 {dimension_numbers = #tpu.dot_dimension_numbers<[1], [0], [0], [1], [0, 0, 1, 1], [], []>} : vector<8x64xbf16>, vector<64x32xbf16>, vector<8x32xf32> -> vector<8x32xf32>
      %c0_212 = arith.constant 0 : index
      %c0_213 = arith.constant 0 : index
      %277 = vector.load %arg17[%c0_212, %c0_213] : memref<1x32xf32, #tpu.memory_space<vmem>>, vector<1x32xf32>
      %278 = vector.broadcast %277 : vector<1x32xf32> to vector<8x32xf32>
      %279 = arith.addf %276, %278 : vector<8x32xf32>
      %c0_214 = arith.constant 0 : index
      %c0_215 = arith.constant 0 : index
      %c0_216 = arith.constant 0 : index
      %280 = vector.load %arg18[%c0_214, %c0_215, %c0_216] : memref<1x8x32xf32, #tpu.memory_space<vmem>>, vector<1x8x32xf32>
      %281 = vector.shape_cast %280 : vector<1x8x32xf32> to vector<8x32xf32>
      %282 = vector.shape_cast %279 : vector<8x32xf32> to vector<1x8x32xf32>
      tpu.vector_store %arg18[%c0_214, %c0_215, %c0_216], %282 {strides = array<i32>} : memref<1x8x32xf32, #tpu.memory_space<vmem>>, vector<1x8x32xf32>,
    } else {
    }
    return
  }
  func.func @transform_0(%arg0: i32, %arg1: i32, %arg2: i32) -> (i32, i32, i32) {
    %c0_i32 = arith.constant 0 : i32
    %c0_i32_0 = arith.constant 0 : i32
    return %arg0, %arg1, %c0_i32 : i32, i32, i32
  }
  func.func @transform_1(%arg0: i32, %arg1: i32, %arg2: i32) -> (i32, i32, i32) {
    %c0_i32 = arith.constant 0 : i32
    %c0_i32_0 = arith.constant 0 : i32
    return %arg0, %arg2, %c0_i32 : i32, i32, i32
  }
  func.func @transform_2(%arg0: i32, %arg1: i32, %arg2: i32) -> (i32, i32, i32) {
    %c0_i32 = arith.constant 0 : i32
    %c0_i32_0 = arith.constant 0 : i32
    return %arg0, %arg2, %c0_i32 : i32, i32, i32
  }
  func.func @transform_3(%arg0: i32, %arg1: i32, %arg2: i32) -> (i32, i32, i32) {
    %c0_i32 = arith.constant 0 : i32
    %c0_i32_0 = arith.constant 0 : i32
    %c0_i32_1 = arith.constant 0 : i32
    %c0_i32_2 = arith.constant 0 : i32
    return %c0_i32, %c0_i32_0, %c0_i32_1 : i32, i32, i32
  }
  func.func @transform_4(%arg0: i32, %arg1: i32, %arg2: i32) -> (i32, i32, i32) {
    %c0_i32 = arith.constant 0 : i32
    %c0_i32_0 = arith.constant 0 : i32
    %c0_i32_1 = arith.constant 0 : i32
    %c0_i32_2 = arith.constant 0 : i32
    return %c0_i32, %c0_i32_0, %c0_i32_1 : i32, i32, i32
  }
  func.func @transform_5(%arg0: i32, %arg1: i32, %arg2: i32) -> (i32, i32, i32) {
    %c0_i32 = arith.constant 0 : i32
    %c0_i32_0 = arith.constant 0 : i32
    %c0_i32_1 = arith.constant 0 : i32
    %c0_i32_2 = arith.constant 0 : i32
    return %c0_i32, %c0_i32_0, %c0_i32_1 : i32, i32, i32
  }
  func.func @transform_6(%arg0: i32, %arg1: i32, %arg2: i32) -> (i32, i32, i32) {
    %c0_i32 = arith.constant 0 : i32
    %c0_i32_0 = arith.constant 0 : i32
    %c0_i32_1 = arith.constant 0 : i32
    %c0_i32_2 = arith.constant 0 : i32
    return %c0_i32, %c0_i32_0, %c0_i32_1 : i32, i32, i32
  }
  func.func @transform_7(%arg0: i32, %arg1: i32, %arg2: i32) -> (i32, i32, i32) {
    %c0_i32 = arith.constant 0 : i32
    %c0_i32_0 = arith.constant 0 : i32
    %c0_i32_1 = arith.constant 0 : i32
    %c0_i32_2 = arith.constant 0 : i32
    return %c0_i32, %c0_i32_0, %c0_i32_1 : i32, i32, i32
  }
  func.func @transform_8(%arg0: i32, %arg1: i32, %arg2: i32) -> (i32, i32, i32) {
    %c0_i32 = arith.constant 0 : i32
    %c0_i32_0 = arith.constant 0 : i32
    %c0_i32_1 = arith.constant 0 : i32
    %c0_i32_2 = arith.constant 0 : i32
    return %c0_i32, %c0_i32_0, %c0_i32_1 : i32, i32, i32
  }
  func.func @transform_9(%arg0: i32, %arg1: i32, %arg2: i32) -> (i32, i32, i32) {
    %c0_i32 = arith.constant 0 : i32
    %c0_i32_0 = arith.constant 0 : i32
    %c0_i32_1 = arith.constant 0 : i32
    %c0_i32_2 = arith.constant 0 : i32
    return %c0_i32, %c0_i32_0, %c0_i32_1 : i32, i32, i32
  }
  func.func @transform_10(%arg0: i32, %arg1: i32, %arg2: i32) -> (i32, i32) {
    %c0_i32 = arith.constant 0 : i32
    %c0_i32_0 = arith.constant 0 : i32
    %c0_i32_1 = arith.constant 0 : i32
    return %c0_i32, %c0_i32_0 : i32, i32
  }
  func.func @transform_11(%arg0: i32, %arg1: i32, %arg2: i32) -> (i32, i32) {
    %c0_i32 = arith.constant 0 : i32
    %c0_i32_0 = arith.constant 0 : i32
    %c0_i32_1 = arith.constant 0 : i32
    return %c0_i32, %c0_i32_0 : i32, i32
  }
  func.func @transform_12(%arg0: i32, %arg1: i32, %arg2: i32) -> (i32, i32) {
    %c0_i32 = arith.constant 0 : i32
    %c0_i32_0 = arith.constant 0 : i32
    %c0_i32_1 = arith.constant 0 : i32
    return %c0_i32, %c0_i32_0 : i32, i32
  }
  func.func @transform_13(%arg0: i32, %arg1: i32, %arg2: i32) -> (i32, i32) {
    %c0_i32 = arith.constant 0 : i32
    %c0_i32_0 = arith.constant 0 : i32
    %c0_i32_1 = arith.constant 0 : i32
    return %c0_i32, %c0_i32_0 : i32, i32
  }
  func.func @transform_14(%arg0: i32, %arg1: i32, %arg2: i32) -> (i32, i32) {
    %c0_i32 = arith.constant 0 : i32
    %c0_i32_0 = arith.constant 0 : i32
    %c0_i32_1 = arith.constant 0 : i32
    return %c0_i32, %c0_i32_0 : i32, i32
  }
  func.func @transform_15(%arg0: i32, %arg1: i32, %arg2: i32) -> (i32, i32, i32) {
    %c0_i32 = arith.constant 0 : i32
    %c0_i32_0 = arith.constant 0 : i32
    return %arg0, %arg1, %c0_i32 : i32, i32, i32
  }
}

</mosaic_0001>

<llo_original>
// kernel: tpu_custom_call.1
$region0: #{tpu_custom_call.1}
  #allocation0 [shape = 'u32[]', space=smem, size = 0x4, offset = 0x4, fixed_abs, tag = 'smem constant byte address 0x4 - core index']
  #allocation1 [shape = 'u32[72,128]{1,0:T(1,128)}', space=vmem, size = 0x9000, scoped, tag = 'internal scratch']
  #allocation2 [shape = 'bf16[4,8,8]{2,1,0:T(8,128)(2,1)}', space=vmem, size = 0x2000, scoped, tag = 'scratch operand']
  #allocation3 [shape = 'f32[4,8,1]{2,1,0:T(8,128)}', space=vmem, size = 0x4000, scoped, tag = 'scratch operand']
  #allocation4 [shape = 'f32[4,8,1]{2,1,0:T(8,128)}', space=vmem, size = 0x4000, scoped, tag = 'scratch operand']
  #allocation5 [shape = 'f32[4,8,8]{2,1,0:T(8,128)}', space=vmem, size = 0x4000, scoped, tag = 'scratch operand']
  %s0 = inlined_call_operand.vmem [shape: bf16[2,8,32], index: 0, kind: input, shape index: {}]
  %s1 = inlined_call_operand.vmem [shape: bf16[2,8,32], index: 1, kind: input, shape index: {}]
  %s2 = inlined_call_operand.vmem [shape: bf16[2,8,32], index: 2, kind: input, shape index: {}]
  %s3 = inlined_call_operand.vmem [shape: bf16[4,32,8], index: 3, kind: input, shape index: {}]
  %s4 = inlined_call_operand.vmem [shape: f32[4,1,8], index: 4, kind: input, shape index: {}]
  %s5 = inlined_call_operand.vmem [shape: bf16[4,32,8], index: 5, kind: input, shape index: {}]
  %s6 = inlined_call_operand.vmem [shape: f32[4,1,8], index: 6, kind: input, shape index: {}]
  %s7 = inlined_call_operand.vmem [shape: bf16[4,32,8], index: 7, kind: input, shape index: {}]
  %s8 = inlined_call_operand.vmem [shape: f32[4,1,8], index: 8, kind: input, shape index: {}]
  %s9 = inlined_call_operand.vmem [shape: bf16[4,8,32], index: 9, kind: input, shape index: {}]
  %s10 = inlined_call_operand.vmem [shape: f32[1,32], index: 10, kind: input, shape index: {}]
  %s11 = inlined_call_operand.vmem [shape: bf16[32,64], index: 11, kind: input, shape index: {}]
  %s12 = inlined_call_operand.vmem [shape: f32[1,64], index: 12, kind: input, shape index: {}]
  %s13 = inlined_call_operand.vmem [shape: bf16[64,32], index: 13, kind: input, shape index: {}]
  %s14 = inlined_call_operand.vmem [shape: f32[1,32], index: 14, kind: input, shape index: {}]
  %s15 = inlined_call_operand.hbm [shape: f32[2,8,32], index: 15, kind: output, shape index: {}]
  %s16 = sld [smem:[#allocation0]]
  $region101: #{tpu_custom_call.1} parent=0
    _
  %s18 = ssub.s32 1, %s16
  %s19 = scalar_select 0, %s18, %s16
  $region1: #{tpu_custom_call.1} parent=0
    #allocation6 [shape = 'u8[8192]{0}', space=vmem, size = 0x2000, scoped, tag = 'output window, operand 0']
    #allocation7 [shape = 's32[2]{0}', space=sflag, size = 0x8, scoped, tag = 'scoped memory for tpu_custom_call.1']
    %20 = vsyncpa [#allocation7], 0
    %s21 = scalar_lea.sflag [#allocation7], 1
    %22 = vsyncpa %s21, 0
    loop: start=0, step=1, limit=4
    $region2: #{tpu_custom_call.1} parent=1 // loop_pre_header
      _
    $region3: #{tpu_custom_call.1} parent=1 // loop_header
      %s24 = sphi 0, %s28
      %p25 = scmp.ge.s32.totalorder %s24, 4
      %s31 = sphi 0, %s50
      %s32 = sphi 0, %s46
      %s33 = sphi 0, %s42
      %s34 = sphi 0, %s31
      %s35 = sphi 0, %s32
      %s36 = sphi 0, %s33
      %s37 = sphi 0, %s34
      %s38 = sphi 0, %s35
      %s39 = sphi 0, %s36
      %s55 = sphi 0, %s57
      %s58 = sphi 0, %s55
      %s59 = sphi 0, %s58
      %s75 = sphi 0, %s59
      %s83 = sphi 0, %s85
      %s86 = sphi 0, %s83
      %s87 = sphi 0, %s86
      %s103 = sphi 0, %s87
      %s111 = sphi 0, %s113
      %s114 = sphi 0, %s111
      %s115 = sphi 0, %s114
      %s131 = sphi 0, %s115
      %s135 = sphi 0, %s135
      %s137 = sphi 0, %s135
      %s138 = sphi 0, %s137
      %s152 = sphi 0, %s138
      %s156 = sphi 0, %s156
      %s158 = sphi 0, %s156
      %s159 = sphi 0, %s158
      %s173 = sphi 0, %s159
      %s177 = sphi 0, %s177
      %s179 = sphi 0, %s177
      %s180 = sphi 0, %s179
      %s194 = sphi 0, %s180
      %s198 = sphi 0, %s198
      %s200 = sphi 0, %s198
      %s201 = sphi 0, %s200
      %s215 = sphi 0, %s201
      %s219 = sphi 0, %s219
      %s221 = sphi 0, %s219
      %s222 = sphi 0, %s221
      %s236 = sphi 0, %s222
      %s240 = sphi 0, %s240
      %s242 = sphi 0, %s240
      %s243 = sphi 0, %s242
      %s257 = sphi 0, %s243
      %s261 = sphi 0, %s261
      %s263 = sphi 0, %s261
      %s264 = sphi 0, %s263
      %s278 = sphi 0, %s264
      %s282 = sphi 0, %s282
      %s284 = sphi 0, %s282
      %s285 = sphi 0, %s284
      %s299 = sphi 0, %s285
      %s303 = sphi 0, %s303
      %s305 = sphi 0, %s303
      %s306 = sphi 0, %s305
      %s320 = sphi 0, %s306
      %s324 = sphi 0, %s324
      %s326 = sphi 0, %s324
      %s327 = sphi 0, %s326
      %s341 = sphi 0, %s327
      %s345 = sphi 0, %s345
      %s347 = sphi 0, %s345
      %s348 = sphi 0, %s347
      %s362 = sphi 0, %s348
      %s366 = sphi 0, %s366
      %s368 = sphi 0, %s366
      %s369 = sphi 0, %s368
      %s383 = sphi 0, %s369
      %s391 = sphi 0, %s393
      %s394 = sphi 0, %s391
      %s395 = sphi 0, %s394
      %s411 = sphi 0, %s395
    $region4: #{tpu_custom_call.1} parent=1 // loop_header_branch
      %27 = sbr.rel (%p25) target = $region8
    $region5: #{tpu_custom_call.1} parent=1 // loop_body
      %s29 = ssub.s32 %s24, 1
      %s30 = ssub.s32 %s24, 2
      %s40 = sadd.s32 1, %s33
      %p41 = scmp.ge.s32.totalorder %s40, 1
      %s42 = scalar_select %p41, 0, %s40
      %s43 = sadd.s32 1, %s32
      %s44 = scalar_select %p41, %s43, %s32
      %p45 = scmp.ge.s32.totalorder %s44, 1
      %s46 = scalar_select %p45, 0, %s44
      %s47 = sadd.s32 1, %s31
      %s48 = scalar_select %p45, %s47, %s31
      %p49 = scmp.ge.s32.totalorder %s48, 2
      %s50 = scalar_select %p49, 0, %s48
      %s51 = ssub.s32 %s31, %s50
      %s52 = ssub.s32 %s32, %s46
      %s53 = sor.u32 %s51, %s52
      %p54 = scmp.eq.s32.totalorder %s53, 0
      %s56 = sadd.s32 %s55, 1
      %s57 = scalar_select %p54, %s55, %s56
      %p60 = pneg %p54
      %p61 = scmp.eq.s32.totalorder %s24, 1
      %p62 = por %p60, %p61
      %p63 = scmp.ne.s32.totalorder %s55, %s58
      %p64 = scmp.eq.s32.totalorder %s24, 0
      %p65 = por %p63, %p64
      %p66 = scmp.ne.s32.totalorder %s55, %s58
      %p67 = scmp.eq.s32.totalorder %s29, 1
      %p68 = por %p66, %p67
      %p69 = scmp.ne.s32.totalorder %s58, %s59
      %p70 = scmp.eq.s32.totalorder %s29, 0
      %p71 = por %p69, %p70
      %p72 = scmp.ne.s32.totalorder %s58, %s59
      %p73 = scmp.eq.s32.totalorder %s30, 1
      %p74 = por %p72, %p73
      %p76 = scmp.ne.s32.totalorder %s59, %s75
      %p77 = scmp.eq.s32.totalorder %s30, 0
      %p78 = por %p76, %p77
      %s79 = ssub.s32 %s31, %s50
      %s80 = ssub.s32 %s33, %s42
      %s81 = sor.u32 %s79, %s80
      %p82 = scmp.eq.s32.totalorder %s81, 0
      %s84 = sadd.s32 %s83, 1
      %s85 = scalar_select %p82, %s83, %s84
      %p88 = pneg %p82
      %p89 = scmp.eq.s32.totalorder %s24, 1
      %p90 = por %p88, %p89
      %p91 = scmp.ne.s32.totalorder %s83, %s86
      %p92 = scmp.eq.s32.totalorder %s24, 0
      %p93 = por %p91, %p92
      %p94 = scmp.ne.s32.totalorder %s83, %s86
      %p95 = scmp.eq.s32.totalorder %s29, 1
      %p96 = por %p94, %p95
      %p97 = scmp.ne.s32.totalorder %s86, %s87
      %p98 = scmp.eq.s32.totalorder %s29, 0
      %p99 = por %p97, %p98
      %p100 = scmp.ne.s32.totalorder %s86, %s87
      %p101 = scmp.eq.s32.totalorder %s30, 1
      %p102 = por %p100, %p101
      %p104 = scmp.ne.s32.totalorder %s87, %s103
      %p105 = scmp.eq.s32.totalorder %s30, 0
      %p106 = por %p104, %p105
      %s107 = ssub.s32 %s31, %s50
      %s108 = ssub.s32 %s33, %s42
      %s109 = sor.u32 %s107, %s108
      %p110 = scmp.eq.s32.totalorder %s109, 0
      %s112 = sadd.s32 %s111, 1
      %s113 = scalar_select %p110, %s111, %s112
      %p116 = pneg %p110
      %p117 = scmp.eq.s32.totalorder %s24, 1
      %p118 = por %p116, %p117
      %p119 = scmp.ne.s32.totalorder %s111, %s114
      %p120 = scmp.eq.s32.totalorder %s24, 0
      %p121 = por %p119, %p120
      %p122 = scmp.ne.s32.totalorder %s111, %s114
      %p123 = scmp.eq.s32.totalorder %s29, 1
      %p124 = por %p122, %p123
      %p125 = scmp.ne.s32.totalorder %s114, %s115
      %p126 = scmp.eq.s32.totalorder %s29, 0
      %p127 = por %p125, %p126
      %p128 = scmp.ne.s32.totalorder %s114, %s115
      %p129 = scmp.eq.s32.totalorder %s30, 1
      %p130 = por %p128, %p129
      %p132 = scmp.ne.s32.totalorder %s115, %s131
      %p133 = scmp.eq.s32.totalorder %s30, 0
      %p134 = por %p132, %p133
      %s136 = sadd.s32 %s135, 1
      %p139 = scmp.eq.s32.totalorder %s24, 1
      %p140 = scmp.ne.s32.totalorder %s135, %s137
      %p141 = scmp.eq.s32.totalorder %s24, 0
      %p142 = por %p140, %p141
      %p143 = scmp.ne.s32.totalorder %s135, %s137
      %p144 = scmp.eq.s32.totalorder %s29, 1
      %p145 = por %p143, %p144
      %p146 = scmp.ne.s32.totalorder %s137, %s138
      %p147 = scmp.eq.s32.totalorder %s29, 0
      %p148 = por %p146, %p147
      %p149 = scmp.ne.s32.totalorder %s137, %s138
      %p150 = scmp.eq.s32.totalorder %s30, 1
      %p151 = por %p149, %p150
      %p153 = scmp.ne.s32.totalorder %s138, %s152
      %p154 = scmp.eq.s32.totalorder %s30, 0
      %p155 = por %p153, %p154
      %s157 = sadd.s32 %s156, 1
      %p160 = scmp.eq.s32.totalorder %s24, 1
      %p161 = scmp.ne.s32.totalorder %s156, %s158
      %p162 = scmp.eq.s32.totalorder %s24, 0
      %p163 = por %p161, %p162
      %p164 = scmp.ne.s32.totalorder %s156, %s158
      %p165 = scmp.eq.s32.totalorder %s29, 1
      %p166 = por %p164, %p165
      %p167 = scmp.ne.s32.totalorder %s158, %s159
      %p168 = scmp.eq.s32.totalorder %s29, 0
      %p169 = por %p167, %p168
      %p170 = scmp.ne.s32.totalorder %s158, %s159
      %p171 = scmp.eq.s32.totalorder %s30, 1
      %p172 = por %p170, %p171
      %p174 = scmp.ne.s32.totalorder %s159, %s173
      %p175 = scmp.eq.s32.totalorder %s30, 0
      %p176 = por %p174, %p175
      %s178 = sadd.s32 %s177, 1
      %p181 = scmp.eq.s32.totalorder %s24, 1
      %p182 = scmp.ne.s32.totalorder %s177, %s179
      %p183 = scmp.eq.s32.totalorder %s24, 0
      %p184 = por %p182, %p183
      %p185 = scmp.ne.s32.totalorder %s177, %s179
      %p186 = scmp.eq.s32.totalorder %s29, 1
      %p187 = por %p185, %p186
      %p188 = scmp.ne.s32.totalorder %s179, %s180
      %p189 = scmp.eq.s32.totalorder %s29, 0
      %p190 = por %p188, %p189
      %p191 = scmp.ne.s32.totalorder %s179, %s180
      %p192 = scmp.eq.s32.totalorder %s30, 1
      %p193 = por %p191, %p192
      %p195 = scmp.ne.s32.totalorder %s180, %s194
      %p196 = scmp.eq.s32.totalorder %s30, 0
      %p197 = por %p195, %p196
      %s199 = sadd.s32 %s198, 1
      %p202 = scmp.eq.s32.totalorder %s24, 1
      %p203 = scmp.ne.s32.totalorder %s198, %s200
      %p204 = scmp.eq.s32.totalorder %s24, 0
      %p205 = por %p203, %p204
      %p206 = scmp.ne.s32.totalorder %s198, %s200
      %p207 = scmp.eq.s32.totalorder %s29, 1
      %p208 = por %p206, %p207
      %p209 = scmp.ne.s32.totalorder %s200, %s201
      %p210 = scmp.eq.s32.totalorder %s29, 0
      %p211 = por %p209, %p210
      %p212 = scmp.ne.s32.totalorder %s200, %s201
      %p213 = scmp.eq.s32.totalorder %s30, 1
      %p214 = por %p212, %p213
      %p216 = scmp.ne.s32.totalorder %s201, %s215
      %p217 = scmp.eq.s32.totalorder %s30, 0
      %p218 = por %p216, %p217
      %s220 = sadd.s32 %s219, 1
      %p223 = scmp.eq.s32.totalorder %s24, 1
      %p224 = scmp.ne.s32.totalorder %s219, %s221
      %p225 = scmp.eq.s32.totalorder %s24, 0
      %p226 = por %p224, %p225
      %p227 = scmp.ne.s32.totalorder %s219, %s221
      %p228 = scmp.eq.s32.totalorder %s29, 1
      %p229 = por %p227, %p228
      %p230 = scmp.ne.s32.totalorder %s221, %s222
      %p231 = scmp.eq.s32.totalorder %s29, 0
      %p232 = por %p230, %p231
      %p233 = scmp.ne.s32.totalorder %s221, %s222
      %p234 = scmp.eq.s32.totalorder %s30, 1
      %p235 = por %p233, %p234
      %p237 = scmp.ne.s32.totalorder %s222, %s236
      %p238 = scmp.eq.s32.totalorder %s30, 0
      %p239 = por %p237, %p238
      %s241 = sadd.s32 %s240, 1
      %p244 = scmp.eq.s32.totalorder %s24, 1
      %p245 = scmp.ne.s32.totalorder %s240, %s242
      %p246 = scmp.eq.s32.totalorder %s24, 0
      %p247 = por %p245, %p246
      %p248 = scmp.ne.s32.totalorder %s240, %s242
      %p249 = scmp.eq.s32.totalorder %s29, 1
      %p250 = por %p248, %p249
      %p251 = scmp.ne.s32.totalorder %s242, %s243
      %p252 = scmp.eq.s32.totalorder %s29, 0
      %p253 = por %p251, %p252
      %p254 = scmp.ne.s32.totalorder %s242, %s243
      %p255 = scmp.eq.s32.totalorder %s30, 1
      %p256 = por %p254, %p255
      %p258 = scmp.ne.s32.totalorder %s243, %s257
      %p259 = scmp.eq.s32.totalorder %s30, 0
      %p260 = por %p258, %p259
      %s262 = sadd.s32 %s261, 1
      %p265 = scmp.eq.s32.totalorder %s24, 1
      %p266 = scmp.ne.s32.totalorder %s261, %s263
      %p267 = scmp.eq.s32.totalorder %s24, 0
      %p268 = por %p266, %p267
      %p269 = scmp.ne.s32.totalorder %s261, %s263
      %p270 = scmp.eq.s32.totalorder %s29, 1
      %p271 = por %p269, %p270
      %p272 = scmp.ne.s32.totalorder %s263, %s264
      %p273 = scmp.eq.s32.totalorder %s29, 0
      %p274 = por %p272, %p273
      %p275 = scmp.ne.s32.totalorder %s263, %s264
      %p276 = scmp.eq.s32.totalorder %s30, 1
      %p277 = por %p275, %p276
      %p279 = scmp.ne.s32.totalorder %s264, %s278
      %p280 = scmp.eq.s32.totalorder %s30, 0
      %p281 = por %p279, %p280
      %s283 = sadd.s32 %s282, 1
      %p286 = scmp.eq.s32.totalorder %s24, 1
      %p287 = scmp.ne.s32.totalorder %s282, %s284
      %p288 = scmp.eq.s32.totalorder %s24, 0
      %p289 = por %p287, %p288
      %p290 = scmp.ne.s32.totalorder %s282, %s284
      %p291 = scmp.eq.s32.totalorder %s29, 1
      %p292 = por %p290, %p291
      %p293 = scmp.ne.s32.totalorder %s284, %s285
      %p294 = scmp.eq.s32.totalorder %s29, 0
      %p295 = por %p293, %p294
      %p296 = scmp.ne.s32.totalorder %s284, %s285
      %p297 = scmp.eq.s32.totalorder %s30, 1
      %p298 = por %p296, %p297
      %p300 = scmp.ne.s32.totalorder %s285, %s299
      %p301 = scmp.eq.s32.totalorder %s30, 0
      %p302 = por %p300, %p301
      %s304 = sadd.s32 %s303, 1
      %p307 = scmp.eq.s32.totalorder %s24, 1
      %p308 = scmp.ne.s32.totalorder %s303, %s305
      %p309 = scmp.eq.s32.totalorder %s24, 0
      %p310 = por %p308, %p309
      %p311 = scmp.ne.s32.totalorder %s303, %s305
      %p312 = scmp.eq.s32.totalorder %s29, 1
      %p313 = por %p311, %p312
      %p314 = scmp.ne.s32.totalorder %s305, %s306
      %p315 = scmp.eq.s32.totalorder %s29, 0
      %p316 = por %p314, %p315
      %p317 = scmp.ne.s32.totalorder %s305, %s306
      %p318 = scmp.eq.s32.totalorder %s30, 1
      %p319 = por %p317, %p318
      %p321 = scmp.ne.s32.totalorder %s306, %s320
      %p322 = scmp.eq.s32.totalorder %s30, 0
      %p323 = por %p321, %p322
      %s325 = sadd.s32 %s324, 1
      %p328 = scmp.eq.s32.totalorder %s24, 1
      %p329 = scmp.ne.s32.totalorder %s324, %s326
      %p330 = scmp.eq.s32.totalorder %s24, 0
      %p331 = por %p329, %p330
      %p332 = scmp.ne.s32.totalorder %s324, %s326
      %p333 = scmp.eq.s32.totalorder %s29, 1
      %p334 = por %p332, %p333
      %p335 = scmp.ne.s32.totalorder %s326, %s327
      %p336 = scmp.eq.s32.totalorder %s29, 0
      %p337 = por %p335, %p336
      %p338 = scmp.ne.s32.totalorder %s326, %s327
      %p339 = scmp.eq.s32.totalorder %s30, 1
      %p340 = por %p338, %p339
      %p342 = scmp.ne.s32.totalorder %s327, %s341
      %p343 = scmp.eq.s32.totalorder %s30, 0
      %p344 = por %p342, %p343
      %s346 = sadd.s32 %s345, 1
      %p349 = scmp.eq.s32.totalorder %s24, 1
      %p350 = scmp.ne.s32.totalorder %s345, %s347
      %p351 = scmp.eq.s32.totalorder %s24, 0
      %p352 = por %p350, %p351
      %p353 = scmp.ne.s32.totalorder %s345, %s347
      %p354 = scmp.eq.s32.totalorder %s29, 1
      %p355 = por %p353, %p354
      %p356 = scmp.ne.s32.totalorder %s347, %s348
      %p357 = scmp.eq.s32.totalorder %s29, 0
      %p358 = por %p356, %p357
      %p359 = scmp.ne.s32.totalorder %s347, %s348
      %p360 = scmp.eq.s32.totalorder %s30, 1
      %p361 = por %p359, %p360
      %p363 = scmp.ne.s32.totalorder %s348, %s362
      %p364 = scmp.eq.s32.totalorder %s30, 0
      %p365 = por %p363, %p364
      %s367 = sadd.s32 %s366, 1
      %p370 = scmp.eq.s32.totalorder %s24, 1
      %p371 = scmp.ne.s32.totalorder %s366, %s368
      %p372 = scmp.eq.s32.totalorder %s24, 0
      %p373 = por %p371, %p372
      %p374 = scmp.ne.s32.totalorder %s366, %s368
      %p375 = scmp.eq.s32.totalorder %s29, 1
      %p376 = por %p374, %p375
      %p377 = scmp.ne.s32.totalorder %s368, %s369
      %p378 = scmp.eq.s32.totalorder %s29, 0
      %p379 = por %p377, %p378
      %p380 = scmp.ne.s32.totalorder %s368, %s369
      %p381 = scmp.eq.s32.totalorder %s30, 1
      %p382 = por %p380, %p381
      %p384 = scmp.ne.s32.totalorder %s369, %s383
      %p385 = scmp.eq.s32.totalorder %s30, 0
      %p386 = por %p384, %p385
      %s387 = ssub.s32 %s31, %s50
      %s388 = ssub.s32 %s32, %s46
      %s389 = sor.u32 %s387, %s388
      %p390 = scmp.eq.s32.totalorder %s389, 0
      %s392 = sadd.s32 %s391, 1
      %s393 = scalar_select %p390, %s391, %s392
      %p396 = pneg %p390
      %p397 = scmp.eq.s32.totalorder %s24, 1
      %p398 = por %p396, %p397
      %p399 = scmp.ne.s32.totalorder %s391, %s394
      %p400 = scmp.eq.s32.totalorder %s24, 0
      %p401 = por %p399, %p400
      %p402 = scmp.ne.s32.totalorder %s391, %s394
      %p403 = scmp.eq.s32.totalorder %s29, 1
      %p404 = por %p402, %p403
      %p405 = scmp.ne.s32.totalorder %s394, %s395
      %p406 = scmp.eq.s32.totalorder %s29, 0
      %p407 = por %p405, %p406
      %p408 = scmp.ne.s32.totalorder %s394, %s395
      %p409 = scmp.eq.s32.totalorder %s30, 1
      %p410 = por %p408, %p409
      %p412 = scmp.ne.s32.totalorder %s395, %s411
      %p413 = scmp.eq.s32.totalorder %s30, 0
      %p414 = por %p412, %p413
      %p415 = scmp.le.s32.totalorder 1, %s24
      %p416 = scmp.lt.s32.totalorder %s24, 3
      %p417 = pnand %p415, %p416
      %p418 = pneg %p417
      // Predicated region
      $region9: #{tpu_custom_call.1} parent=5 // pred_check
        _
      $region10: #{tpu_custom_call.1} parent=5 // pred_check_branch
        %420 = sbr.rel (%p417) target = $region12
      $region11: #{tpu_custom_call.1} parent=5 // pred_region
        %s421 = ssub.s32 %s24, 1
        // Predicated region
        $region13: #{tpu_custom_call.1} parent=11 // pred_check
          %p422 = pneg %p148
        $region14: #{tpu_custom_call.1} parent=11 // pred_check_branch
          %424 = sbr.rel (%p422) target = $region16
        $region15: #{tpu_custom_call.1} parent=11 // pred_region
          _
        $region16: #{tpu_custom_call.1} parent=11 // pred_fallthru
          _
        // Predicated region
        $region17: #{tpu_custom_call.1} parent=11 // pred_check
          %p425 = pneg %p169
        $region18: #{tpu_custom_call.1} parent=11 // pred_check_branch
          %427 = sbr.rel (%p425) target = $region20
        $region19: #{tpu_custom_call.1} parent=11 // pred_region
          _
        $region20: #{tpu_custom_call.1} parent=11 // pred_fallthru
          _
        // Predicated region
        $region21: #{tpu_custom_call.1} parent=11 // pred_check
          %p428 = pneg %p190
        $region22: #{tpu_custom_call.1} parent=11 // pred_check_branch
          %430 = sbr.rel (%p428) target = $region24
        $region23: #{tpu_custom_call.1} parent=11 // pred_region
          _
        $region24: #{tpu_custom_call.1} parent=11 // pred_fallthru
          _
        // Predicated region
        $region25: #{tpu_custom_call.1} parent=11 // pred_check
          %p431 = pneg %p211
        $region26: #{tpu_custom_call.1} parent=11 // pred_check_branch
          %433 = sbr.rel (%p431) target = $region28
        $region27: #{tpu_custom_call.1} parent=11 // pred_region
          _
        $region28: #{tpu_custom_call.1} parent=11 // pred_fallthru
          _
        // Predicated region
        $region29: #{tpu_custom_call.1} parent=11 // pred_check
          %p434 = pneg %p232
        $region30: #{tpu_custom_call.1} parent=11 // pred_check_branch
          %436 = sbr.rel (%p434) target = $region32
        $region31: #{tpu_custom_call.1} parent=11 // pred_region
          _
        $region32: #{tpu_custom_call.1} parent=11 // pred_fallthru
          _
        // Predicated region
        $region33: #{tpu_custom_call.1} parent=11 // pred_check
          %p437 = pneg %p253
        $region34: #{tpu_custom_call.1} parent=11 // pred_check_branch
          %439 = sbr.rel (%p437) target = $region36
        $region35: #{tpu_custom_call.1} parent=11 // pred_region
          _
        $region36: #{tpu_custom_call.1} parent=11 // pred_fallthru
          _
        // Predicated region
        $region37: #{tpu_custom_call.1} parent=11 // pred_check
          %p440 = pneg %p274
        $region38: #{tpu_custom_call.1} parent=11 // pred_check_branch
          %442 = sbr.rel (%p440) target = $region40
        $region39: #{tpu_custom_call.1} parent=11 // pred_region
          _
        $region40: #{tpu_custom_call.1} parent=11 // pred_fallthru
          _
        // Predicated region
        $region41: #{tpu_custom_call.1} parent=11 // pred_check
          %p443 = pneg %p295
        $region42: #{tpu_custom_call.1} parent=11 // pred_check_branch
          %445 = sbr.rel (%p443) target = $region44
        $region43: #{tpu_custom_call.1} parent=11 // pred_region
          _
        $region44: #{tpu_custom_call.1} parent=11 // pred_fallthru
          _
        // Predicated region
        $region45: #{tpu_custom_call.1} parent=11 // pred_check
          %p446 = pneg %p316
        $region46: #{tpu_custom_call.1} parent=11 // pred_check_branch
          %448 = sbr.rel (%p446) target = $region48
        $region47: #{tpu_custom_call.1} parent=11 // pred_region
          _
        $region48: #{tpu_custom_call.1} parent=11 // pred_fallthru
          _
        // Predicated region
        $region49: #{tpu_custom_call.1} parent=11 // pred_check
          %p449 = pneg %p337
        $region50: #{tpu_custom_call.1} parent=11 // pred_check_branch
          %451 = sbr.rel (%p449) target = $region52
        $region51: #{tpu_custom_call.1} parent=11 // pred_region
          _
        $region52: #{tpu_custom_call.1} parent=11 // pred_fallthru
          _
        // Predicated region
        $region53: #{tpu_custom_call.1} parent=11 // pred_check
          %p452 = pneg %p358
        $region54: #{tpu_custom_call.1} parent=11 // pred_check_branch
          %454 = sbr.rel (%p452) target = $region56
        $region55: #{tpu_custom_call.1} parent=11 // pred_region
          _
        $region56: #{tpu_custom_call.1} parent=11 // pred_fallthru
          _
        // Predicated region
        $region57: #{tpu_custom_call.1} parent=11 // pred_check
          %p455 = pneg %p379
        $region58: #{tpu_custom_call.1} parent=11 // pred_check_branch
          %457 = sbr.rel (%p455) target = $region60
        $region59: #{tpu_custom_call.1} parent=11 // pred_region
          _
        $region60: #{tpu_custom_call.1} parent=11 // pred_fallthru
          _
      $region12: #{tpu_custom_call.1} parent=5 // pred_fallthru
        _
      %p458 = scmp.lt.s32.totalorder %s24, 2
      // Predicated region
      $region61: #{tpu_custom_call.1} parent=5 // pred_check
        %p459 = pneg %p458
      $region62: #{tpu_custom_call.1} parent=5 // pred_check_branch
        %461 = sbr.rel (%p459) target = $region64
      $region63: #{tpu_custom_call.1} parent=5 // pred_region
        // Predicated region
        $region65: #{tpu_custom_call.1} parent=63 // pred_check
          %p462 = pneg %p65
        $region66: #{tpu_custom_call.1} parent=63 // pred_check_branch
          %464 = sbr.rel (%p462) target = $region68
        $region67: #{tpu_custom_call.1} parent=63 // pred_region
          %p465 = scmp.lt.s32.totalorder %s31, 1
          %s466 = scalar_select %p465, %s31, 1
          %p467 = scmp.lt.s32.totalorder %s32, 0
          %s468 = scalar_select %p467, %s32, 0
          %s469 = sadd.s32 %s468, %s466
          %s470 = smul.addr %s469, 4
          %s471 = scalar_lea.vmem %s0, %s470
        $region68: #{tpu_custom_call.1} parent=63 // pred_fallthru
          _
        // Predicated region
        $region69: #{tpu_custom_call.1} parent=63 // pred_check
          %p472 = pneg %p93
        $region70: #{tpu_custom_call.1} parent=63 // pred_check_branch
          %474 = sbr.rel (%p472) target = $region72
        $region71: #{tpu_custom_call.1} parent=63 // pred_region
          %p475 = scmp.lt.s32.totalorder %s31, 1
          %s476 = scalar_select %p475, %s31, 1
          %p477 = scmp.lt.s32.totalorder %s33, 0
          %s478 = scalar_select %p477, %s33, 0
          %s479 = sadd.s32 %s478, %s476
          %s480 = smul.addr %s479, 4
          %s481 = scalar_lea.vmem %s1, %s480
        $region72: #{tpu_custom_call.1} parent=63 // pred_fallthru
          _
        // Predicated region
        $region73: #{tpu_custom_call.1} parent=63 // pred_check
          %p482 = pneg %p121
        $region74: #{tpu_custom_call.1} parent=63 // pred_check_branch
          %484 = sbr.rel (%p482) target = $region76
        $region75: #{tpu_custom_call.1} parent=63 // pred_region
          %p485 = scmp.lt.s32.totalorder %s31, 1
          %s486 = scalar_select %p485, %s31, 1
          %p487 = scmp.lt.s32.totalorder %s33, 0
          %s488 = scalar_select %p487, %s33, 0
          %s489 = sadd.s32 %s488, %s486
          %s490 = smul.addr %s489, 4
          %s491 = scalar_lea.vmem %s2, %s490
        $region76: #{tpu_custom_call.1} parent=63 // pred_fallthru
          _
      $region64: #{tpu_custom_call.1} parent=5 // pred_fallthru
        _
      %p492 = scmp.le.s32.totalorder 1, %s24
      %p493 = scmp.lt.s32.totalorder %s24, 3
      %p494 = pnand %p492, %p493
      %p495 = pneg %p494
      // Predicated region
      $region77: #{tpu_custom_call.1} parent=5 // pred_check
        _
      $region78: #{tpu_custom_call.1} parent=5 // pred_check_branch
        %497 = sbr.rel (%p494) target = $region80
      $region79: #{tpu_custom_call.1} parent=5 // pred_region
        %s498 = ssub.s32 %s24, 1
        %p499 = scmp.lt.s32.totalorder %s34, 1
        %s500 = scalar_select %p499, %s34, 1
        %p501 = scmp.lt.s32.totalorder %s35, 0
        %s502 = scalar_select %p501, %s35, 0
        %s503 = sadd.s32 %s502, %s500
        %s504 = smul.addr %s503, 4
        %s505 = scalar_lea.vmem %s0, %s504
        %p506 = pneg %p71
        %p507 = pneg %p68
        %p508 = scmp.lt.s32.totalorder %s34, 1
        %s509 = scalar_select %p508, %s34, 1
        %p510 = scmp.lt.s32.totalorder %s36, 0
        %s511 = scalar_select %p510, %s36, 0
        %s512 = sadd.s32 %s511, %s509
        %s513 = smul.addr %s512, 4
        %s514 = scalar_lea.vmem %s1, %s513
        %p515 = pneg %p99
        %p516 = pneg %p96
        %p517 = scmp.lt.s32.totalorder %s34, 1
        %s518 = scalar_select %p517, %s34, 1
        %p519 = scmp.lt.s32.totalorder %s36, 0
        %s520 = scalar_select %p519, %s36, 0
        %s521 = sadd.s32 %s520, %s518
        %s522 = smul.addr %s521, 4
        %s523 = scalar_lea.vmem %s2, %s522
        %p524 = pneg %p127
        %p525 = pneg %p124
        %p526 = pneg %p148
        %p527 = pneg %p145
        %p528 = pneg %p169
        %p529 = pneg %p166
        %p530 = pneg %p190
        %p531 = pneg %p187
        %p532 = pneg %p211
        %p533 = pneg %p208
        %p534 = pneg %p232
        %p535 = pneg %p229
        %p536 = pneg %p253
        %p537 = pneg %p250
        %p538 = pneg %p274
        %p539 = pneg %p271
        %p540 = pneg %p295
        %p541 = pneg %p292
        %p542 = pneg %p316
        %p543 = pneg %p313
        %p544 = pneg %p337
        %p545 = pneg %p334
        %p546 = pneg %p358
        %p547 = pneg %p355
        %p548 = pneg %p379
        %p549 = pneg %p376
        %p550 = pneg %p407
        %p551 = pneg %p404
        %s552 = sand.u32 %s394, 1
        %s553 = scalar_lea.sflag [#allocation7], %s552
        %s554 = sand.u32 %s394, 1
        %s555 = smul.addr %s554, 8
        %s556 = scalar_lea.vmem [#allocation6], %s555
        %p557 = scmp.lt.s32.totalorder %s34, 1
        %s558 = scalar_select %p557, %s34, 1
        %p559 = scmp.lt.s32.totalorder %s35, 0
        %s560 = scalar_select %p559, %s35, 0
        %s561 = sadd.s32 %s560, %s558
        %s562 = smul.addr %s561, 4
        %s563 = scalar_lea.vmem %s0, %s562
        %p564 = scmp.lt.s32.totalorder %s34, 1
        %s565 = scalar_select %p564, %s34, 1
        %p566 = scmp.lt.s32.totalorder %s36, 0
        %s567 = scalar_select %p566, %s36, 0
        %s568 = sadd.s32 %s567, %s565
        %s569 = smul.addr %s568, 4
        %s570 = scalar_lea.vmem %s1, %s569
        %p571 = scmp.lt.s32.totalorder %s34, 1
        %s572 = scalar_select %p571, %s34, 1
        %p573 = scmp.lt.s32.totalorder %s36, 0
        %s574 = scalar_select %p573, %s36, 0
        %s575 = sadd.s32 %s574, %s572
        %s576 = smul.addr %s575, 4
        %s577 = scalar_lea.vmem %s2, %s576
        %p579 = scmp.eq.s32.totalorder %s36, 0
        // Predicated region
        $region81: #{tpu_custom_call.1} parent=79 // pred_check
          %p580 = pneg %p579
        $region82: #{tpu_custom_call.1} parent=79 // pred_check_branch
          %582 = sbr.rel (%p580) target = $region84
        $region83: #{tpu_custom_call.1} parent=79 // pred_region
          %v583 = vld [vmem:[%s563] sm:$0xf]
          %v584 = vld [vmem:[%s3] sm:$0xf]
          %v585 = vld [vmem:[%s3 + $0x4] sm:$0xf]
          %v586 = vld [vmem:[%s3 + $0x8] sm:$0xf]
          %v587 = vld [vmem:[%s3 + $0xc] sm:$0xf]
          %v588 = vld [vmem:[%s4] sm:$0x1]
          %v590 = vperm.slane %v588, 0
          %v596 = vunpack.c.l.b16 %v584
          %v597 = vunpack.c.l.b16 %v585
          %v598 = vunpack.c.l.b16 %v586
          %v599 = vunpack.c.l.b16 %v587
          %v600 = vpack.c.b16 %v597, %v596
          %v601 = vpack.c.b16 %v599, %v598
          %vm604 = vcmask 261120
          %v606 = vsel %vm604, %v583, 0
          %608 = vmatpush.bf16.msra.mxu0 0
          %609 = vmatpush.bf16.msra.mxu0 0
          %610 = vmatpush.bf16.msra.mxu0 0
          %611 = vmatpush.bf16.msra.mxu0 0
          %612 = vmatpush.bf16.msra.mxu0 0
          %613 = vmatpush.bf16.msra.mxu0 0
          %614 = vmatpush.bf16.msra.mxu0 %v601
          %615 = vmatpush.bf16.msra.mxu0 %v600
          %616 = vmatmul.bf16.gmra.mxu0 %v606
          %v617 = vpop.f32.mrf.mxu0
          %v618 = vadd.f32 %v590, %v617
          %v619 = vpop.f32.mrf.mxu0
          %620 = vdwg.mxu0
          %v621 = vmul.f32 %v618, 0.35355338
          %v622 = vpack.c.bf16 %v621, %v621
          %vm623 = vcmask 60416
          %624 = vst.msk [vmem:[#allocation2] sm:$0xf] %vm623, %v622
          %s625 = scalar_lea.vmem %s3, 16
          %v626 = vld [vmem:[%s625] sm:$0xf]
          %v627 = vld [vmem:[%s625 + $0x4] sm:$0xf]
          %v628 = vld [vmem:[%s625 + $0x8] sm:$0xf]
          %v629 = vld [vmem:[%s625 + $0xc] sm:$0xf]
          %s630 = scalar_lea.vmem %s4, 1
          %v631 = vld [vmem:[%s630] sm:$0x1]
          %v633 = vperm.slane %v631, 0
          %v639 = vunpack.c.l.b16 %v626
          %v640 = vunpack.c.l.b16 %v627
          %v641 = vunpack.c.l.b16 %v628
          %v642 = vunpack.c.l.b16 %v629
          %v643 = vpack.c.b16 %v640, %v639
          %v644 = vpack.c.b16 %v642, %v641
          %647 = vmatpush.bf16.msra.mxu0 0
          %648 = vmatpush.bf16.msra.mxu0 0
          %649 = vmatpush.bf16.msra.mxu0 0
          %650 = vmatpush.bf16.msra.mxu0 0
          %651 = vmatpush.bf16.msra.mxu0 0
          %652 = vmatpush.bf16.msra.mxu0 0
          %653 = vmatpush.bf16.msra.mxu0 %v644
          %654 = vmatpush.bf16.msra.mxu0 %v643
          %655 = vmatmul.bf16.gmra.mxu0 %v606
          %v656 = vpop.f32.mrf.mxu0
          %v657 = vadd.f32 %v633, %v656
          %v658 = vpop.f32.mrf.mxu0
          %659 = vdwg.mxu0
          %v660 = vmul.f32 %v657, 0.35355338
          %v661 = vpack.c.bf16 %v660, %v660
          %s662 = scalar_lea.vmem [#allocation2], 4
          %663 = vst.msk [vmem:[%s662] sm:$0xf] %vm623, %v661
          %s664 = scalar_lea.vmem %s3, 32
          %v665 = vld [vmem:[%s664] sm:$0xf]
          %v666 = vld [vmem:[%s664 + $0x4] sm:$0xf]
          %v667 = vld [vmem:[%s664 + $0x8] sm:$0xf]
          %v668 = vld [vmem:[%s664 + $0xc] sm:$0xf]
          %s669 = scalar_lea.vmem %s4, 2
          %v670 = vld [vmem:[%s669] sm:$0x1]
          %v672 = vperm.slane %v670, 0
          %v678 = vunpack.c.l.b16 %v665
          %v679 = vunpack.c.l.b16 %v666
          %v680 = vunpack.c.l.b16 %v667
          %v681 = vunpack.c.l.b16 %v668
          %v682 = vpack.c.b16 %v679, %v678
          %v683 = vpack.c.b16 %v681, %v680
          %686 = vmatpush.bf16.msra.mxu0 0
          %687 = vmatpush.bf16.msra.mxu0 0
          %688 = vmatpush.bf16.msra.mxu0 0
          %689 = vmatpush.bf16.msra.mxu0 0
          %690 = vmatpush.bf16.msra.mxu0 0
          %691 = vmatpush.bf16.msra.mxu0 0
          %692 = vmatpush.bf16.msra.mxu0 %v683
          %693 = vmatpush.bf16.msra.mxu0 %v682
          %694 = vmatmul.bf16.gmra.mxu0 %v606
          %v695 = vpop.f32.mrf.mxu0
          %v696 = vadd.f32 %v672, %v695
          %v697 = vpop.f32.mrf.mxu0
          %698 = vdwg.mxu0
          %v699 = vmul.f32 %v696, 0.35355338
          %v700 = vpack.c.bf16 %v699, %v699
          %s701 = scalar_lea.vmem [#allocation2], 8
          %702 = vst.msk [vmem:[%s701] sm:$0xf] %vm623, %v700
          %s703 = scalar_lea.vmem %s3, 48
          %v704 = vld [vmem:[%s703] sm:$0xf]
          %v705 = vld [vmem:[%s703 + $0x4] sm:$0xf]
          %v706 = vld [vmem:[%s703 + $0x8] sm:$0xf]
          %v707 = vld [vmem:[%s703 + $0xc] sm:$0xf]
          %s708 = scalar_lea.vmem %s4, 3
          %v709 = vld [vmem:[%s708] sm:$0x1]
          %v711 = vperm.slane %v709, 0
          %v717 = vunpack.c.l.b16 %v704
          %v718 = vunpack.c.l.b16 %v705
          %v719 = vunpack.c.l.b16 %v706
          %v720 = vunpack.c.l.b16 %v707
          %v721 = vpack.c.b16 %v718, %v717
          %v722 = vpack.c.b16 %v720, %v719
          %725 = vmatpush.bf16.msra.mxu0 0
          %726 = vmatpush.bf16.msra.mxu0 0
          %727 = vmatpush.bf16.msra.mxu0 0
          %728 = vmatpush.bf16.msra.mxu0 0
          %729 = vmatpush.bf16.msra.mxu0 0
          %730 = vmatpush.bf16.msra.mxu0 0
          %731 = vmatpush.bf16.msra.mxu0 %v722
          %732 = vmatpush.bf16.msra.mxu0 %v721
          %733 = vmatmul.bf16.gmra.mxu0 %v606
          %v734 = vpop.f32.mrf.mxu0
          %v735 = vadd.f32 %v711, %v734
          %v736 = vpop.f32.mrf.mxu0
          %737 = vdwg.mxu0
          %v738 = vmul.f32 %v735, 0.35355338
          %v739 = vpack.c.bf16 %v738, %v738
          %s740 = scalar_lea.vmem [#allocation2], 12
          %741 = vst.msk [vmem:[%s740] sm:$0xf] %vm623, %v739
          %vm742 = vcmask 7168
          %743 = vst.msk [vmem:[#allocation3] sm:$0xff] %vm742, -inf
          %744 = vst.msk [vmem:[#allocation3 + $0x8] sm:$0xff] %vm742, -inf
          %745 = vst.msk [vmem:[#allocation3 + $0x10] sm:$0xff] %vm742, -inf
          %746 = vst.msk [vmem:[#allocation3 + $0x18] sm:$0xff] %vm742, -inf
          %747 = vst.msk [vmem:[#allocation4] sm:$0xff] %vm742, 0.0
          %748 = vst.msk [vmem:[#allocation4 + $0x8] sm:$0xff] %vm742, 0.0
          %749 = vst.msk [vmem:[#allocation4 + $0x10] sm:$0xff] %vm742, 0.0
          %750 = vst.msk [vmem:[#allocation4 + $0x18] sm:$0xff] %vm742, 0.0
          %vm751 = vcmask 64512
          %752 = vst.msk [vmem:[#allocation5] sm:$0xff] %vm751, 0.0
          %753 = vst.msk [vmem:[#allocation5 + $0x8] sm:$0xff] %vm751, 0.0
          %754 = vst.msk [vmem:[#allocation5 + $0x10] sm:$0xff] %vm751, 0.0
          %755 = vst.msk [vmem:[#allocation5 + $0x18] sm:$0xff] %vm751, 0.0
        $region84: #{tpu_custom_call.1} parent=79 // pred_fallthru
          _
        %v756 = vld [vmem:[%s570] sm:$0xf]
        %v757 = vld [vmem:[%s577] sm:$0xf]
        %v758 = vld [vmem:[%s5] sm:$0xf]
        %v759 = vld [vmem:[%s5 + $0x4] sm:$0xf]
        %v760 = vld [vmem:[%s5 + $0x8] sm:$0xf]
        %v761 = vld [vmem:[%s5 + $0xc] sm:$0xf]
        %v762 = vld [vmem:[%s6] sm:$0x1]
        %v764 = vperm.slane %v762, 0
        %v770 = vunpack.c.l.b16 %v758
        %v771 = vunpack.c.l.b16 %v759
        %v772 = vunpack.c.l.b16 %v760
        %v773 = vunpack.c.l.b16 %v761
        %v774 = vpack.c.b16 %v771, %v770
        %v775 = vpack.c.b16 %v773, %v772
        %vm778 = vcmask 261120
        %v780 = vsel %vm778, %v756, 0
        %782 = vmatpush.bf16.msra.mxu0 0
        %783 = vmatpush.bf16.msra.mxu0 0
        %784 = vmatpush.bf16.msra.mxu0 0
        %785 = vmatpush.bf16.msra.mxu0 0
        %786 = vmatpush.bf16.msra.mxu0 0
        %787 = vmatpush.bf16.msra.mxu0 0
        %788 = vmatpush.bf16.msra.mxu0 %v775
        %789 = vmatpush.bf16.msra.mxu0 %v774
        %790 = vmatmul.bf16.gmra.mxu0 %v780
        %v791 = vpop.f32.mrf.mxu0
        %v792 = vadd.f32 %v764, %v791
        %v793 = vpop.f32.mrf.mxu0
        %794 = vdwg.mxu0
        %v795 = vpack.c.bf16 %v792, %v792
        %v796 = vld [vmem:[%s7] sm:$0xf]
        %v797 = vld [vmem:[%s7 + $0x4] sm:$0xf]
        %v798 = vld [vmem:[%s7 + $0x8] sm:$0xf]
        %v799 = vld [vmem:[%s7 + $0xc] sm:$0xf]
        %v800 = vld [vmem:[%s8] sm:$0x1]
        %v802 = vperm.slane %v800, 0
        %v808 = vunpack.c.l.b16 %v796
        %v809 = vunpack.c.l.b16 %v797
        %v810 = vunpack.c.l.b16 %v798
        %v811 = vunpack.c.l.b16 %v799
        %v812 = vpack.c.b16 %v809, %v808
        %v813 = vpack.c.b16 %v811, %v810
        %v817 = vsel %vm778, %v757, 0
        %819 = vmatpush.bf16.msra.mxu0 0
        %820 = vmatpush.bf16.msra.mxu0 0
        %821 = vmatpush.bf16.msra.mxu0 0
        %822 = vmatpush.bf16.msra.mxu0 0
        %823 = vmatpush.bf16.msra.mxu0 0
        %824 = vmatpush.bf16.msra.mxu0 0
        %825 = vmatpush.bf16.msra.mxu0 %v813
        %826 = vmatpush.bf16.msra.mxu0 %v812
        %827 = vmatmul.bf16.gmra.mxu0 %v817
        %v828 = vpop.f32.mrf.mxu0
        %v829 = vadd.f32 %v802, %v828
        %v830 = vpop.f32.mrf.mxu0
        %831 = vdwg.mxu0
        %v832 = vpack.c.bf16 %v829, %v829
        %v833 = vld [vmem:[#allocation2] sm:$0xf]
        %vm834 = vcmask 64512
        %v836 = vsel %vm834, %v833, 0
        %v839 = vsel %vm834, %v795, 0
        %841 = vmatpush.bf16.xpose.msra.mxu0 0
        %842 = vmatpush.bf16.xpose.msra.mxu0 0
        %843 = vmatpush.bf16.xpose.msra.mxu0 0
        %844 = vmatpush.bf16.xpose.msra.mxu0 0
        %845 = vmatpush.bf16.xpose.msra.mxu0 0
        %846 = vmatpush.bf16.xpose.msra.mxu0 0
        %847 = vmatpush.bf16.xpose.msra.mxu0 0
        %848 = vmatpush.bf16.xpose.msra.mxu0 %v839
        %849 = vmatmul.bf16.gmra.mxu0 %v836
        %v850 = vpop.f32.mrf.mxu0
        %v851 = vadd.f32 0.0, %v850
        %v852 = vpop.f32.mrf.mxu0
        %853 = vdwg.mxu0
        %v854 = vld [vmem:[#allocation3] sm:$0xff]
        %v855 = vsel %vm834, %v851, -inf
        %856 = vmax.xlane.f32.xlu0 %v855
        %v857 = vpop.xlane.xlu0 %856
        %v858 = vmax.f32 %v854, %v857
        %v859 = vsub.f32 %v854, %v858
        %v860 = vmul.f32 %v859, 1.442695
        %v861 = vpow.pop %v860
        %863 = vset.pattern.permute.xlu0 0
        %864 = vperm.xlu0 %863, %v858
        %v865 = vpop.permute.xlu0 %864
        %v867 = vsub.f32 %v851, %v865
        %v868 = vmul.f32 %v867, 1.442695
        %v869 = vpow.pop %v868
        %v870 = vld [vmem:[#allocation4] sm:$0xff]
        %v871 = vmul.f32 %v861, %v870
        %v872 = vsel %vm834, %v869, 0.0
        %873 = vadd.xlane.f32.xlu0 %v872
        %v874 = vpop.xlane.xlu0 %873
        %v875 = vadd.f32 %v871, %v874
        %vm876 = vcmask 7168
        %877 = vst.msk [vmem:[#allocation4] sm:$0xff] %vm876, %v875
        %v878 = vld [vmem:[#allocation5] sm:$0xff]
        %880 = vset.pattern.permute.xlu0 0
        %881 = vperm.xlu0 %880, %v861
        %v882 = vpop.permute.xlu0 %881
        %v884 = vmul.f32 %v882, %v878
        %v885 = vpack.c.bf16 %v869, %v869
        %v887 = vsel %vm834, %v885, 0
        %vm889 = vcmask 1043456
        %v891 = vsel %vm889, %v832, 0
        %893 = vmatpush.bf16.msra.mxu0 0
        %894 = vmatpush.bf16.msra.mxu0 0
        %895 = vmatpush.bf16.msra.mxu0 0
        %896 = vmatpush.bf16.msra.mxu0 0
        %897 = vmatpush.bf16.msra.mxu0 0
        %898 = vmatpush.bf16.msra.mxu0 0
        %899 = vmatpush.bf16.msra.mxu0 0
        %900 = vmatpush.bf16.msra.mxu0 %v891
        %901 = vmatmul.bf16.gmra.mxu0 %v887
        %v902 = vpop.f32.mrf.mxu0
        %v903 = vadd.f32 0.0, %v902
        %v904 = vpop.f32.mrf.mxu0
        %905 = vdwg.mxu0
        %v906 = vadd.f32 %v884, %v903
        %907 = vst.msk [vmem:[#allocation5] sm:$0xff] %vm834, %v906
        %908 = vst.msk [vmem:[#allocation3] sm:$0xff] %vm876, %v858
        %s909 = scalar_lea.vmem %s5, 16
        %v910 = vld [vmem:[%s909] sm:$0xf]
        %v911 = vld [vmem:[%s909 + $0x4] sm:$0xf]
        %v912 = vld [vmem:[%s909 + $0x8] sm:$0xf]
        %v913 = vld [vmem:[%s909 + $0xc] sm:$0xf]
        %s914 = scalar_lea.vmem %s6, 1
        %v915 = vld [vmem:[%s914] sm:$0x1]
        %v917 = vperm.slane %v915, 0
        %v923 = vunpack.c.l.b16 %v910
        %v924 = vunpack.c.l.b16 %v911
        %v925 = vunpack.c.l.b16 %v912
        %v926 = vunpack.c.l.b16 %v913
        %v927 = vpack.c.b16 %v924, %v923
        %v928 = vpack.c.b16 %v926, %v925
        %931 = vmatpush.bf16.msra.mxu0 0
        %932 = vmatpush.bf16.msra.mxu0 0
        %933 = vmatpush.bf16.msra.mxu0 0
        %934 = vmatpush.bf16.msra.mxu0 0
        %935 = vmatpush.bf16.msra.mxu0 0
        %936 = vmatpush.bf16.msra.mxu0 0
        %937 = vmatpush.bf16.msra.mxu0 %v928
        %938 = vmatpush.bf16.msra.mxu0 %v927
        %939 = vmatmul.bf16.gmra.mxu0 %v780
        %v940 = vpop.f32.mrf.mxu0
        %v941 = vadd.f32 %v917, %v940
        %v942 = vpop.f32.mrf.mxu0
        %943 = vdwg.mxu0
        %v944 = vpack.c.bf16 %v941, %v941
        %s945 = scalar_lea.vmem %s7, 16
        %v946 = vld [vmem:[%s945] sm:$0xf]
        %v947 = vld [vmem:[%s945 + $0x4] sm:$0xf]
        %v948 = vld [vmem:[%s945 + $0x8] sm:$0xf]
        %v949 = vld [vmem:[%s945 + $0xc] sm:$0xf]
        %s950 = scalar_lea.vmem %s8, 1
        %v951 = vld [vmem:[%s950] sm:$0x1]
        %v953 = vperm.slane %v951, 0
        %v959 = vunpack.c.l.b16 %v946
        %v960 = vunpack.c.l.b16 %v947
        %v961 = vunpack.c.l.b16 %v948
        %v962 = vunpack.c.l.b16 %v949
        %v963 = vpack.c.b16 %v960, %v959
        %v964 = vpack.c.b16 %v962, %v961
        %967 = vmatpush.bf16.msra.mxu0 0
        %968 = vmatpush.bf16.msra.mxu0 0
        %969 = vmatpush.bf16.msra.mxu0 0
        %970 = vmatpush.bf16.msra.mxu0 0
        %971 = vmatpush.bf16.msra.mxu0 0
        %972 = vmatpush.bf16.msra.mxu0 0
        %973 = vmatpush.bf16.msra.mxu0 %v964
        %974 = vmatpush.bf16.msra.mxu0 %v963
        %975 = vmatmul.bf16.gmra.mxu0 %v817
        %v976 = vpop.f32.mrf.mxu0
        %v977 = vadd.f32 %v953, %v976
        %v978 = vpop.f32.mrf.mxu0
        %979 = vdwg.mxu0
        %v980 = vpack.c.bf16 %v977, %v977
        %s981 = scalar_lea.vmem [#allocation2], 4
        %v982 = vld [vmem:[%s981] sm:$0xf]
        %v984 = vsel %vm834, %v982, 0
        %v987 = vsel %vm834, %v944, 0
        %989 = vmatpush.bf16.xpose.msra.mxu0 0
        %990 = vmatpush.bf16.xpose.msra.mxu0 0
        %991 = vmatpush.bf16.xpose.msra.mxu0 0
        %992 = vmatpush.bf16.xpose.msra.mxu0 0
        %993 = vmatpush.bf16.xpose.msra.mxu0 0
        %994 = vmatpush.bf16.xpose.msra.mxu0 0
        %995 = vmatpush.bf16.xpose.msra.mxu0 0
        %996 = vmatpush.bf16.xpose.msra.mxu0 %v987
        %997 = vmatmul.bf16.gmra.mxu0 %v984
        %v998 = vpop.f32.mrf.mxu0
        %v999 = vadd.f32 0.0, %v998
        %v1000 = vpop.f32.mrf.mxu0
        %1001 = vdwg.mxu0
        %s1002 = scalar_lea.vmem [#allocation3], 8
        %v1003 = vld [vmem:[%s1002] sm:$0xff]
        %v1004 = vsel %vm834, %v999, -inf
        %1005 = vmax.xlane.f32.xlu0 %v1004
        %v1006 = vpop.xlane.xlu0 %1005
        %v1007 = vmax.f32 %v1003, %v1006
        %v1008 = vsub.f32 %v1003, %v1007
        %v1009 = vmul.f32 %v1008, 1.442695
        %v1010 = vpow.pop %v1009
        %1012 = vset.pattern.permute.xlu0 0
        %1013 = vperm.xlu0 %1012, %v1007
        %v1014 = vpop.permute.xlu0 %1013
        %v1016 = vsub.f32 %v999, %v1014
        %v1017 = vmul.f32 %v1016, 1.442695
        %v1018 = vpow.pop %v1017
        %s1019 = scalar_lea.vmem [#allocation4], 8
        %v1020 = vld [vmem:[%s1019] sm:$0xff]
        %v1021 = vmul.f32 %v1010, %v1020
        %v1022 = vsel %vm834, %v1018, 0.0
        %1023 = vadd.xlane.f32.xlu0 %v1022
        %v1024 = vpop.xlane.xlu0 %1023
        %v1025 = vadd.f32 %v1021, %v1024
        %1026 = vst.msk [vmem:[%s1019] sm:$0xff] %vm876, %v1025
        %s1027 = scalar_lea.vmem [#allocation5], 8
        %v1028 = vld [vmem:[%s1027] sm:$0xff]
        %1030 = vset.pattern.permute.xlu0 0
        %1031 = vperm.xlu0 %1030, %v1010
        %v1032 = vpop.permute.xlu0 %1031
        %v1034 = vmul.f32 %v1032, %v1028
        %v1035 = vpack.c.bf16 %v1018, %v1018
        %v1037 = vsel %vm834, %v1035, 0
        %v1040 = vsel %vm889, %v980, 0
        %1042 = vmatpush.bf16.msra.mxu0 0
        %1043 = vmatpush.bf16.msra.mxu0 0
        %1044 = vmatpush.bf16.msra.mxu0 0
        %1045 = vmatpush.bf16.msra.mxu0 0
        %1046 = vmatpush.bf16.msra.mxu0 0
        %1047 = vmatpush.bf16.msra.mxu0 0
        %1048 = vmatpush.bf16.msra.mxu0 0
        %1049 = vmatpush.bf16.msra.mxu0 %v1040
        %1050 = vmatmul.bf16.gmra.mxu0 %v1037
        %v1051 = vpop.f32.mrf.mxu0
        %v1052 = vadd.f32 0.0, %v1051
        %v1053 = vpop.f32.mrf.mxu0
        %1054 = vdwg.mxu0
        %v1055 = vadd.f32 %v1034, %v1052
        %1056 = vst.msk [vmem:[%s1027] sm:$0xff] %vm834, %v1055
        %1057 = vst.msk [vmem:[%s1002] sm:$0xff] %vm876, %v1007
        %s1058 = scalar_lea.vmem %s5, 32
        %v1059 = vld [vmem:[%s1058] sm:$0xf]
        %v1060 = vld [vmem:[%s1058 + $0x4] sm:$0xf]
        %v1061 = vld [vmem:[%s1058 + $0x8] sm:$0xf]
        %v1062 = vld [vmem:[%s1058 + $0xc] sm:$0xf]
        %s1063 = scalar_lea.vmem %s6, 2
        %v1064 = vld [vmem:[%s1063] sm:$0x1]
        %v1066 = vperm.slane %v1064, 0
        %v1072 = vunpack.c.l.b16 %v1059
        %v1073 = vunpack.c.l.b16 %v1060
        %v1074 = vunpack.c.l.b16 %v1061
        %v1075 = vunpack.c.l.b16 %v1062
        %v1076 = vpack.c.b16 %v1073, %v1072
        %v1077 = vpack.c.b16 %v1075, %v1074
        %1080 = vmatpush.bf16.msra.mxu0 0
        %1081 = vmatpush.bf16.msra.mxu0 0
        %1082 = vmatpush.bf16.msra.mxu0 0
        %1083 = vmatpush.bf16.msra.mxu0 0
        %1084 = vmatpush.bf16.msra.mxu0 0
        %1085 = vmatpush.bf16.msra.mxu0 0
        %1086 = vmatpush.bf16.msra.mxu0 %v1077
        %1087 = vmatpush.bf16.msra.mxu0 %v1076
        %1088 = vmatmul.bf16.gmra.mxu0 %v780
        %v1089 = vpop.f32.mrf.mxu0
        %v1090 = vadd.f32 %v1066, %v1089
        %v1091 = vpop.f32.mrf.mxu0
        %1092 = vdwg.mxu0
        %v1093 = vpack.c.bf16 %v1090, %v1090
        %s1094 = scalar_lea.vmem %s7, 32
        %v1095 = vld [vmem:[%s1094] sm:$0xf]
        %v1096 = vld [vmem:[%s1094 + $0x4] sm:$0xf]
        %v1097 = vld [vmem:[%s1094 + $0x8] sm:$0xf]
        %v1098 = vld [vmem:[%s1094 + $0xc] sm:$0xf]
        %s1099 = scalar_lea.vmem %s8, 2
        %v1100 = vld [vmem:[%s1099] sm:$0x1]
        %v1102 = vperm.slane %v1100, 0
        %v1108 = vunpack.c.l.b16 %v1095
        %v1109 = vunpack.c.l.b16 %v1096
        %v1110 = vunpack.c.l.b16 %v1097
        %v1111 = vunpack.c.l.b16 %v1098
        %v1112 = vpack.c.b16 %v1109, %v1108
        %v1113 = vpack.c.b16 %v1111, %v1110
        %1116 = vmatpush.bf16.msra.mxu0 0
        %1117 = vmatpush.bf16.msra.mxu0 0
        %1118 = vmatpush.bf16.msra.mxu0 0
        %1119 = vmatpush.bf16.msra.mxu0 0
        %1120 = vmatpush.bf16.msra.mxu0 0
        %1121 = vmatpush.bf16.msra.mxu0 0
        %1122 = vmatpush.bf16.msra.mxu0 %v1113
        %1123 = vmatpush.bf16.msra.mxu0 %v1112
        %1124 = vmatmul.bf16.gmra.mxu0 %v817
        %v1125 = vpop.f32.mrf.mxu0
        %v1126 = vadd.f32 %v1102, %v1125
        %v1127 = vpop.f32.mrf.mxu0
        %1128 = vdwg.mxu0
        %v1129 = vpack.c.bf16 %v1126, %v1126
        %s1130 = scalar_lea.vmem [#allocation2], 8
        %v1131 = vld [vmem:[%s1130] sm:$0xf]
        %v1133 = vsel %vm834, %v1131, 0
        %v1136 = vsel %vm834, %v1093, 0
        %1138 = vmatpush.bf16.xpose.msra.mxu0 0
        %1139 = vmatpush.bf16.xpose.msra.mxu0 0
        %1140 = vmatpush.bf16.xpose.msra.mxu0 0
        %1141 = vmatpush.bf16.xpose.msra.mxu0 0
        %1142 = vmatpush.bf16.xpose.msra.mxu0 0
        %1143 = vmatpush.bf16.xpose.msra.mxu0 0
        %1144 = vmatpush.bf16.xpose.msra.mxu0 0
        %1145 = vmatpush.bf16.xpose.msra.mxu0 %v1136
        %1146 = vmatmul.bf16.gmra.mxu0 %v1133
        %v1147 = vpop.f32.mrf.mxu0
        %v1148 = vadd.f32 0.0, %v1147
        %v1149 = vpop.f32.mrf.mxu0
        %1150 = vdwg.mxu0
        %s1151 = scalar_lea.vmem [#allocation3], 16
        %v1152 = vld [vmem:[%s1151] sm:$0xff]
        %v1153 = vsel %vm834, %v1148, -inf
        %1154 = vmax.xlane.f32.xlu0 %v1153
        %v1155 = vpop.xlane.xlu0 %1154
        %v1156 = vmax.f32 %v1152, %v1155
        %v1157 = vsub.f32 %v1152, %v1156
        %v1158 = vmul.f32 %v1157, 1.442695
        %v1159 = vpow.pop %v1158
        %1161 = vset.pattern.permute.xlu0 0
        %1162 = vperm.xlu0 %1161, %v1156
        %v1163 = vpop.permute.xlu0 %1162
        %v1165 = vsub.f32 %v1148, %v1163
        %v1166 = vmul.f32 %v1165, 1.442695
        %v1167 = vpow.pop %v1166
        %s1168 = scalar_lea.vmem [#allocation4], 16
        %v1169 = vld [vmem:[%s1168] sm:$0xff]
        %v1170 = vmul.f32 %v1159, %v1169
        %v1171 = vsel %vm834, %v1167, 0.0
        %1172 = vadd.xlane.f32.xlu0 %v1171
        %v1173 = vpop.xlane.xlu0 %1172
        %v1174 = vadd.f32 %v1170, %v1173
        %1175 = vst.msk [vmem:[%s1168] sm:$0xff] %vm876, %v1174
        %s1176 = scalar_lea.vmem [#allocation5], 16
        %v1177 = vld [vmem:[%s1176] sm:$0xff]
        %1179 = vset.pattern.permute.xlu0 0
        %1180 = vperm.xlu0 %1179, %v1159
        %v1181 = vpop.permute.xlu0 %1180
        %v1183 = vmul.f32 %v1181, %v1177
        %v1184 = vpack.c.bf16 %v1167, %v1167
        %v1186 = vsel %vm834, %v1184, 0
        %v1189 = vsel %vm889, %v1129, 0
        %1191 = vmatpush.bf16.msra.mxu0 0
        %1192 = vmatpush.bf16.msra.mxu0 0
        %1193 = vmatpush.bf16.msra.mxu0 0
        %1194 = vmatpush.bf16.msra.mxu0 0
        %1195 = vmatpush.bf16.msra.mxu0 0
        %1196 = vmatpush.bf16.msra.mxu0 0
        %1197 = vmatpush.bf16.msra.mxu0 0
        %1198 = vmatpush.bf16.msra.mxu0 %v1189
        %1199 = vmatmul.bf16.gmra.mxu0 %v1186
        %v1200 = vpop.f32.mrf.mxu0
        %v1201 = vadd.f32 0.0, %v1200
        %v1202 = vpop.f32.mrf.mxu0
        %1203 = vdwg.mxu0
        %v1204 = vadd.f32 %v1183, %v1201
        %1205 = vst.msk [vmem:[%s1176] sm:$0xff] %vm834, %v1204
        %1206 = vst.msk [vmem:[%s1151] sm:$0xff] %vm876, %v1156
        %s1207 = scalar_lea.vmem %s5, 48
        %v1208 = vld [vmem:[%s1207] sm:$0xf]
        %v1209 = vld [vmem:[%s1207 + $0x4] sm:$0xf]
        %v1210 = vld [vmem:[%s1207 + $0x8] sm:$0xf]
        %v1211 = vld [vmem:[%s1207 + $0xc] sm:$0xf]
        %s1212 = scalar_lea.vmem %s6, 3
        %v1213 = vld [vmem:[%s1212] sm:$0x1]
        %v1215 = vperm.slane %v1213, 0
        %v1221 = vunpack.c.l.b16 %v1208
        %v1222 = vunpack.c.l.b16 %v1209
        %v1223 = vunpack.c.l.b16 %v1210
        %v1224 = vunpack.c.l.b16 %v1211
        %v1225 = vpack.c.b16 %v1222, %v1221
        %v1226 = vpack.c.b16 %v1224, %v1223
        %1229 = vmatpush.bf16.msra.mxu0 0
        %1230 = vmatpush.bf16.msra.mxu0 0
        %1231 = vmatpush.bf16.msra.mxu0 0
        %1232 = vmatpush.bf16.msra.mxu0 0
        %1233 = vmatpush.bf16.msra.mxu0 0
        %1234 = vmatpush.bf16.msra.mxu0 0
        %1235 = vmatpush.bf16.msra.mxu0 %v1226
        %1236 = vmatpush.bf16.msra.mxu0 %v1225
        %1237 = vmatmul.bf16.gmra.mxu0 %v780
        %v1238 = vpop.f32.mrf.mxu0
        %v1239 = vadd.f32 %v1215, %v1238
        %v1240 = vpop.f32.mrf.mxu0
        %1241 = vdwg.mxu0
        %v1242 = vpack.c.bf16 %v1239, %v1239
        %s1243 = scalar_lea.vmem %s7, 48
        %v1244 = vld [vmem:[%s1243] sm:$0xf]
        %v1245 = vld [vmem:[%s1243 + $0x4] sm:$0xf]
        %v1246 = vld [vmem:[%s1243 + $0x8] sm:$0xf]
        %v1247 = vld [vmem:[%s1243 + $0xc] sm:$0xf]
        %s1248 = scalar_lea.vmem %s8, 3
        %v1249 = vld [vmem:[%s1248] sm:$0x1]
        %v1251 = vperm.slane %v1249, 0
        %v1257 = vunpack.c.l.b16 %v1244
        %v1258 = vunpack.c.l.b16 %v1245
        %v1259 = vunpack.c.l.b16 %v1246
        %v1260 = vunpack.c.l.b16 %v1247
        %v1261 = vpack.c.b16 %v1258, %v1257
        %v1262 = vpack.c.b16 %v1260, %v1259
        %1265 = vmatpush.bf16.msra.mxu0 0
        %1266 = vmatpush.bf16.msra.mxu0 0
        %1267 = vmatpush.bf16.msra.mxu0 0
        %1268 = vmatpush.bf16.msra.mxu0 0
        %1269 = vmatpush.bf16.msra.mxu0 0
        %1270 = vmatpush.bf16.msra.mxu0 0
        %1271 = vmatpush.bf16.msra.mxu0 %v1262
        %1272 = vmatpush.bf16.msra.mxu0 %v1261
        %1273 = vmatmul.bf16.gmra.mxu0 %v817
        %v1274 = vpop.f32.mrf.mxu0
        %v1275 = vadd.f32 %v1251, %v1274
        %v1276 = vpop.f32.mrf.mxu0
        %1277 = vdwg.mxu0
        %v1278 = vpack.c.bf16 %v1275, %v1275
        %s1279 = scalar_lea.vmem [#allocation2], 12
        %v1280 = vld [vmem:[%s1279] sm:$0xf]
        %v1282 = vsel %vm834, %v1280, 0
        %v1285 = vsel %vm834, %v1242, 0
        %1287 = vmatpush.bf16.xpose.msra.mxu0 0
        %1288 = vmatpush.bf16.xpose.msra.mxu0 0
        %1289 = vmatpush.bf16.xpose.msra.mxu0 0
        %1290 = vmatpush.bf16.xpose.msra.mxu0 0
        %1291 = vmatpush.bf16.xpose.msra.mxu0 0
        %1292 = vmatpush.bf16.xpose.msra.mxu0 0
        %1293 = vmatpush.bf16.xpose.msra.mxu0 0
        %1294 = vmatpush.bf16.xpose.msra.mxu0 %v1285
        %1295 = vmatmul.bf16.gmra.mxu0 %v1282
        %v1296 = vpop.f32.mrf.mxu0
        %v1297 = vadd.f32 0.0, %v1296
        %v1298 = vpop.f32.mrf.mxu0
        %1299 = vdwg.mxu0
        %s1300 = scalar_lea.vmem [#allocation3], 24
        %v1301 = vld [vmem:[%s1300] sm:$0xff]
        %v1302 = vsel %vm834, %v1297, -inf
        %1303 = vmax.xlane.f32.xlu0 %v1302
        %v1304 = vpop.xlane.xlu0 %1303
        %v1305 = vmax.f32 %v1301, %v1304
        %v1306 = vsub.f32 %v1301, %v1305
        %v1307 = vmul.f32 %v1306, 1.442695
        %v1308 = vpow.pop %v1307
        %1310 = vset.pattern.permute.xlu0 0
        %1311 = vperm.xlu0 %1310, %v1305
        %v1312 = vpop.permute.xlu0 %1311
        %v1314 = vsub.f32 %v1297, %v1312
        %v1315 = vmul.f32 %v1314, 1.442695
        %v1316 = vpow.pop %v1315
        %s1317 = scalar_lea.vmem [#allocation4], 24
        %v1318 = vld [vmem:[%s1317] sm:$0xff]
        %v1319 = vmul.f32 %v1308, %v1318
        %v1320 = vsel %vm834, %v1316, 0.0
        %1321 = vadd.xlane.f32.xlu0 %v1320
        %v1322 = vpop.xlane.xlu0 %1321
        %v1323 = vadd.f32 %v1319, %v1322
        %1324 = vst.msk [vmem:[%s1317] sm:$0xff] %vm876, %v1323
        %s1325 = scalar_lea.vmem [#allocation5], 24
        %v1326 = vld [vmem:[%s1325] sm:$0xff]
        %1328 = vset.pattern.permute.xlu0 0
        %1329 = vperm.xlu0 %1328, %v1308
        %v1330 = vpop.permute.xlu0 %1329
        %v1332 = vmul.f32 %v1330, %v1326
        %v1333 = vpack.c.bf16 %v1316, %v1316
        %v1335 = vsel %vm834, %v1333, 0
        %v1338 = vsel %vm889, %v1278, 0
        %1340 = vmatpush.bf16.msra.mxu0 0
        %1341 = vmatpush.bf16.msra.mxu0 0
        %1342 = vmatpush.bf16.msra.mxu0 0
        %1343 = vmatpush.bf16.msra.mxu0 0
        %1344 = vmatpush.bf16.msra.mxu0 0
        %1345 = vmatpush.bf16.msra.mxu0 0
        %1346 = vmatpush.bf16.msra.mxu0 0
        %1347 = vmatpush.bf16.msra.mxu0 %v1338
        %1348 = vmatmul.bf16.gmra.mxu0 %v1335
        %v1349 = vpop.f32.mrf.mxu0
        %v1350 = vadd.f32 0.0, %v1349
        %v1351 = vpop.f32.mrf.mxu0
        %1352 = vdwg.mxu0
        %v1353 = vadd.f32 %v1332, %v1350
        %1354 = vst.msk [vmem:[%s1325] sm:$0xff] %vm834, %v1353
        %1355 = vst.msk [vmem:[%s1300] sm:$0xff] %vm876, %v1305
        // Predicated region
        $region85: #{tpu_custom_call.1} parent=79 // pred_check
          %p1356 = pneg %p579
        $region86: #{tpu_custom_call.1} parent=79 // pred_check_branch
          %1358 = sbr.rel (%p1356) target = $region88
        $region87: #{tpu_custom_call.1} parent=79 // pred_region
          %v1359 = vld [vmem:[#allocation5] sm:$0xff]
          %v1360 = vld [vmem:[#allocation4] sm:$0xff]
          %v1361 = vrcp.pop %v1360
          %1363 = vset.pattern.permute.xlu0 0
          %1364 = vperm.xlu0 %1363, %v1361
          %v1365 = vpop.permute.xlu0 %1364
          %v1367 = vmul.f32 %v1359, %v1365
          %v1368 = vpack.c.bf16 %v1367, %v1367
          %v1369 = vld [vmem:[%s9] sm:$0xf]
          %v1370 = vld [vmem:[%s1027] sm:$0xff]
          %v1371 = vld [vmem:[%s1019] sm:$0xff]
          %v1372 = vrcp.pop %v1371
          %1374 = vset.pattern.permute.xlu0 0
          %1375 = vperm.xlu0 %1374, %v1372
          %v1376 = vpop.permute.xlu0 %1375
          %v1378 = vmul.f32 %v1370, %v1376
          %v1379 = vpack.c.bf16 %v1378, %v1378
          %s1380 = scalar_lea.vmem %s9, 4
          %v1381 = vld [vmem:[%s1380] sm:$0xf]
          %v1383 = vsel %vm834, %v1379, 0
          %v1386 = vsel %vm889, %v1381, 0
          %1388 = vmatpush.bf16.msra.mxu0 0
          %1389 = vmatpush.bf16.msra.mxu0 0
          %1390 = vmatpush.bf16.msra.mxu0 0
          %1391 = vmatpush.bf16.msra.mxu0 0
          %1392 = vmatpush.bf16.msra.mxu0 0
          %1393 = vmatpush.bf16.msra.mxu0 0
          %1394 = vmatpush.bf16.msra.mxu0 0
          %1395 = vmatpush.bf16.msra.mxu0 %v1386
          %1396 = vmatmul.bf16.gmra.mxu0 %v1383
          %v1397 = vpop.f32.mrf.mxu0
          %v1398 = vadd.f32 0.0, %v1397
          %v1399 = vpop.f32.mrf.mxu0
          %1400 = vdwg.mxu0
          %v1402 = vsel %vm834, %v1368, 0
          %v1405 = vsel %vm889, %v1369, 0
          %1407 = vmatpush.bf16.msra.mxu0 0
          %1408 = vmatpush.bf16.msra.mxu0 0
          %1409 = vmatpush.bf16.msra.mxu0 0
          %1410 = vmatpush.bf16.msra.mxu0 0
          %1411 = vmatpush.bf16.msra.mxu0 0
          %1412 = vmatpush.bf16.msra.mxu0 0
          %1413 = vmatpush.bf16.msra.mxu0 0
          %1414 = vmatpush.bf16.msra.mxu0 %v1405
          %1415 = vmatmul.bf16.gmra.mxu0 %v1402
          %v1416 = vpop.f32.mrf.mxu0
          %v1417 = vadd.f32 %v1398, %v1416
          %v1418 = vpop.f32.mrf.mxu0
          %1419 = vdwg.mxu0
          %v1420 = vld [vmem:[%s1176] sm:$0xff]
          %v1421 = vld [vmem:[%s1168] sm:$0xff]
          %v1422 = vrcp.pop %v1421
          %1424 = vset.pattern.permute.xlu0 0
          %1425 = vperm.xlu0 %1424, %v1422
          %v1426 = vpop.permute.xlu0 %1425
          %v1428 = vmul.f32 %v1420, %v1426
          %v1429 = vpack.c.bf16 %v1428, %v1428
          %s1430 = scalar_lea.vmem %s9, 8
          %v1431 = vld [vmem:[%s1430] sm:$0xf]
          %v1433 = vsel %vm834, %v1429, 0
          %v1436 = vsel %vm889, %v1431, 0
          %1438 = vmatpush.bf16.msra.mxu0 0
          %1439 = vmatpush.bf16.msra.mxu0 0
          %1440 = vmatpush.bf16.msra.mxu0 0
          %1441 = vmatpush.bf16.msra.mxu0 0
          %1442 = vmatpush.bf16.msra.mxu0 0
          %1443 = vmatpush.bf16.msra.mxu0 0
          %1444 = vmatpush.bf16.msra.mxu0 0
          %1445 = vmatpush.bf16.msra.mxu0 %v1436
          %1446 = vmatmul.bf16.gmra.mxu0 %v1433
          %v1447 = vpop.f32.mrf.mxu0
          %v1448 = vadd.f32 0.0, %v1447
          %v1449 = vpop.f32.mrf.mxu0
          %1450 = vdwg.mxu0
          %v1451 = vadd.f32 %v1417, %v1448
          %v1452 = vld [vmem:[%s1325] sm:$0xff]
          %v1453 = vld [vmem:[%s1317] sm:$0xff]
          %v1454 = vrcp.pop %v1453
          %1456 = vset.pattern.permute.xlu0 0
          %1457 = vperm.xlu0 %1456, %v1454
          %v1458 = vpop.permute.xlu0 %1457
          %v1460 = vmul.f32 %v1452, %v1458
          %v1461 = vpack.c.bf16 %v1460, %v1460
          %s1462 = scalar_lea.vmem %s9, 12
          %v1463 = vld [vmem:[%s1462] sm:$0xf]
          %v1465 = vsel %vm834, %v1461, 0
          %v1468 = vsel %vm889, %v1463, 0
          %1470 = vmatpush.bf16.msra.mxu0 0
          %1471 = vmatpush.bf16.msra.mxu0 0
          %1472 = vmatpush.bf16.msra.mxu0 0
          %1473 = vmatpush.bf16.msra.mxu0 0
          %1474 = vmatpush.bf16.msra.mxu0 0
          %1475 = vmatpush.bf16.msra.mxu0 0
          %1476 = vmatpush.bf16.msra.mxu0 0
          %1477 = vmatpush.bf16.msra.mxu0 %v1468
          %1478 = vmatmul.bf16.gmra.mxu0 %v1465
          %v1479 = vpop.f32.mrf.mxu0
          %v1480 = vadd.f32 0.0, %v1479
          %v1481 = vpop.f32.mrf.mxu0
          %1482 = vdwg.mxu0
          %v1483 = vadd.f32 %v1451, %v1480
          %v1484 = vld [vmem:[%s10] sm:$0x1]
          %v1486 = vperm.slane %v1484, 0
          %v1488 = vadd.f32 %v1483, %v1486
          %v1489 = vpack.c.bf16 %v1488, %v1488
          %v1490 = vld [vmem:[%s11] sm:$0xf]
          %v1491 = vld [vmem:[%s11 + $0x4] sm:$0xf]
          %v1492 = vld [vmem:[%s11 + $0x8] sm:$0xf]
          %v1493 = vld [vmem:[%s11 + $0xc] sm:$0xf]
          %v1494 = vld [vmem:[%s12] sm:$0x1]
          %v1496 = vperm.slane %v1494, 0
          %v1502 = vunpack.c.l.b16 %v1490
          %v1503 = vunpack.c.l.b16 %v1491
          %v1504 = vunpack.c.l.b16 %v1492
          %v1505 = vunpack.c.l.b16 %v1493
          %v1506 = vpack.c.b16 %v1503, %v1502
          %v1507 = vpack.c.b16 %v1505, %v1504
          %v1511 = vsel %vm778, %v1489, 0
          %1513 = vmatpush.bf16.msra.mxu0 0
          %1514 = vmatpush.bf16.msra.mxu0 0
          %1515 = vmatpush.bf16.msra.mxu0 0
          %1516 = vmatpush.bf16.msra.mxu0 0
          %1517 = vmatpush.bf16.msra.mxu0 0
          %1518 = vmatpush.bf16.msra.mxu0 0
          %1519 = vmatpush.bf16.msra.mxu0 %v1507
          %1520 = vmatpush.bf16.msra.mxu0 %v1506
          %1521 = vmatmul.bf16.gmra.mxu0 %v1511
          %v1522 = vpop.f32.mrf.mxu0
          %v1523 = vadd.f32 %v1496, %v1522
          %v1524 = vpop.f32.mrf.mxu0
          %1525 = vdwg.mxu0
          %v1526 = vmax.f32 %v1523, 0.0
          %v1527 = vpack.c.bf16 %v1526, %v1526
          %v1528 = vld [vmem:[%s13] sm:$0xf]
          %v1529 = vld [vmem:[%s13 + $0x4] sm:$0xf]
          %v1530 = vld [vmem:[%s13 + $0x8] sm:$0xf]
          %v1531 = vld [vmem:[%s13 + $0xc] sm:$0xf]
          %v1532 = vld [vmem:[%s13 + $0x10] sm:$0xf]
          %v1533 = vld [vmem:[%s13 + $0x14] sm:$0xf]
          %v1534 = vld [vmem:[%s13 + $0x18] sm:$0xf]
          %v1535 = vld [vmem:[%s13 + $0x1c] sm:$0xf]
          %v1536 = vld [vmem:[%s14] sm:$0x1]
          %v1538 = vperm.slane %v1536, 0
          %v1548 = vunpack.c.l.b16 %v1528
          %v1549 = vunpack.c.l.b16 %v1529
          %v1550 = vunpack.c.l.b16 %v1530
          %v1551 = vunpack.c.l.b16 %v1531
          %v1552 = vunpack.c.l.b16 %v1532
          %v1553 = vunpack.c.l.b16 %v1533
          %v1554 = vunpack.c.l.b16 %v1534
          %v1555 = vunpack.c.l.b16 %v1535
          %v1556 = vpack.c.b16 %v1549, %v1548
          %v1557 = vpack.c.b16 %v1551, %v1550
          %v1558 = vpack.c.b16 %v1553, %v1552
          %v1559 = vpack.c.b16 %v1555, %v1554
          %vm1564 = vcmask 523264
          %v1566 = vsel %vm1564, %v1527, 0
          %1568 = vmatpush.bf16.msra.mxu0 0
          %1569 = vmatpush.bf16.msra.mxu0 0
          %1570 = vmatpush.bf16.msra.mxu0 0
          %1571 = vmatpush.bf16.msra.mxu0 0
          %1572 = vmatpush.bf16.msra.mxu0 %v1559
          %1573 = vmatpush.bf16.msra.mxu0 %v1558
          %1574 = vmatpush.bf16.msra.mxu0 %v1557
          %1575 = vmatpush.bf16.msra.mxu0 %v1556
          %1576 = vmatmul.bf16.gmra.mxu0 %v1566
          %v1577 = vpop.f32.mrf.mxu0
          %v1578 = vadd.f32 %v1538, %v1577
          %v1579 = vpop.f32.mrf.mxu0
          %1580 = vdwg.mxu0
          %1581 = vst.msk [vmem:[%s556] sm:$0xff] %vm778, %v1578
        $region88: #{tpu_custom_call.1} parent=79 // pred_fallthru
          _
        %s1582 = sand.u32 %s394, 1
        %s1583 = scalar_lea.sflag [#allocation7], %s1582
        %s1584 = sand.u32 %s394, 1
        %s1585 = smul.addr %s1584, 8
        %s1586 = scalar_lea.vmem [#allocation6], %s1585
        // Predicated region
        $region89: #{tpu_custom_call.1} parent=79 // pred_check
          %p1587 = pneg %p404
        $region90: #{tpu_custom_call.1} parent=79 // pred_check_branch
          %1589 = sbr.rel (%p1587) target = $region92
        $region91: #{tpu_custom_call.1} parent=79 // pred_region
          %1591 = vsyncadd %s1583, 0
          %s1592 = sadd.s32 %s35, %s34
          %s1593 = smul.addr %s1592, 8
          %s1594 = scalar_lea.hbm %s15, %s1593
          %s1596 = sshll.u32 %s1586, 4
          %s1597 = int_to_ptr.vmem [resolvable:$true] %s1596
          %s1598 = sshll.u32 %s1594, 4
          %s1599 = int_to_ptr.hbm [resolvable:$true] %s1598
          %1601 = dma.vmem_to_hbm [thread:$0]  %s1597, 128, %s1599, %s1583
        $region92: #{tpu_custom_call.1} parent=79 // pred_fallthru
          _
      $region80: #{tpu_custom_call.1} parent=5 // pred_fallthru
        _
      %p1602 = scmp.le.s32.totalorder 2, %s24
      // Predicated region
      $region93: #{tpu_custom_call.1} parent=5 // pred_check
        %p1603 = pneg %p1602
      $region94: #{tpu_custom_call.1} parent=5 // pred_check_branch
        %1605 = sbr.rel (%p1603) target = $region96
      $region95: #{tpu_custom_call.1} parent=5 // pred_region
        %s1606 = ssub.s32 %s24, 2
        // Predicated region
        $region97: #{tpu_custom_call.1} parent=95 // pred_check
          %p1607 = pneg %p410
        $region98: #{tpu_custom_call.1} parent=95 // pred_check_branch
          %1609 = sbr.rel (%p1607) target = $region100
        $region99: #{tpu_custom_call.1} parent=95 // pred_region
          %s1610 = sand.u32 %s395, 1
          %s1611 = scalar_lea.sflag [#allocation7], %s1610
          %s1612 = sand.u32 %s395, 1
          %s1613 = smul.addr %s1612, 8
          %s1614 = scalar_lea.vmem [#allocation6], %s1613
          %1616 = dma.done %s1611, 128
        $region100: #{tpu_custom_call.1} parent=95 // pred_fallthru
          _
      $region96: #{tpu_custom_call.1} parent=5 // pred_fallthru
        _
    $region6: #{tpu_custom_call.1} parent=1 // loop_footer
      %s28 = sadd.s32 1, %s24
    $region7: #{tpu_custom_call.1} parent=1 // loop_footer_branch
      %23 = sbr.rel target = $region3
    $region8: #{tpu_custom_call.1} parent=1 // loop_exit
      _
    %1617 = vsyncpa [#allocation7], 1
    %s1618 = scalar_lea.sflag [#allocation7], 1
    %1619 = vsyncpa %s1618, 1

</llo_original>
